<compile_context>
chip_gen: v7x
topology: tpu7x:2x2x1
jax: 0.10.0
libtpu: 0.0.40
codegen_flags: <defaults>
</compile_context>

<pallas_src>
import math

import jax
import jax.numpy as jnp
from jax.experimental import pallas as pl
from jax.experimental.pallas import tpu as pltpu


def _round_up(x, m):
    return (x + m - 1) // m * m


def _cdiv(a, b):
    return -(-a // b)


# ----------------------------------------------------------------------------
# Fused Pallas kernel
# ----------------------------------------------------------------------------
def make_fused_kernel(num_main, num_cls, num_box, C, D, H):
    """Kernel ref layout per grid step:
       (F_tile, x_tile, [3 bf16 slabs per block]*, out_proj_slab, out_tile, fx_buf)."""
    CD = C + D
    H2 = 2 * H

    def kernel(*refs):
        f_ref, x_ref = refs[0], refs[1]
        out_ref, fx_buf = refs[-2], refs[-1]
        w = refs[2:-2]

        # Persistent [F | x] bf16 operand buffer: F lanes written once per tile,
        # only the x lanes are overwritten before each block's single layer-1 dot.
        fx_buf[:, :C] = f_ref[...].astype(jnp.bfloat16)
        x = x_ref[...].astype(jnp.float32)

        def residual_block(x_in, a1, a2, a3):
            fx_buf[:, C:] = x_in.astype(jnp.bfloat16)
            # layer 1: map_t & map_s fused along the output axis, one K = C+D dot.
            h = (jnp.dot(fx_buf[...], a1[:CD, :],
                         preferred_element_type=jnp.float32)
                 + a1[CD:CD + 1, :].astype(jnp.float32))
            h = jnp.maximum(h, 0.0)
            # layer 2: block-diagonal packed (t / s branches independent).
            h = (jnp.dot(h.astype(jnp.bfloat16), a2[:H2, :],
                         preferred_element_type=jnp.float32)
                 + a2[H2:H2 + 1, :].astype(jnp.float32))
            h = jnp.maximum(h, 0.0)
            # layer 3: block-diagonal packed -> cols [0:D] = t, [D:2D] = s.
            ts = (jnp.dot(h.astype(jnp.bfloat16), a3[:H2, :],
                          preferred_element_type=jnp.float32)
                  + a3[H2:H2 + 1, :].astype(jnp.float32))
            t = ts[:, :D]
            s = jnp.clip(ts[:, D:2 * D], -2.0, 2.0)         # Hardtanh(-2, 2)
            return (x_in - t) * jnp.exp(-s)                  # use_difference + scaling

        idx = 0
        for _ in range(num_main):
            x = residual_block(x, w[idx], w[idx + 1], w[idx + 2]); idx += 3
        x_cls = x
        x_box = x
        for _ in range(num_cls):
            x_cls = residual_block(x_cls, w[idx], w[idx + 1], w[idx + 2]); idx += 3
        for _ in range(num_box):
            x_box = residual_block(x_box, w[idx], w[idx + 1], w[idx + 2]); idx += 3

        # Final class + box projections share one slab: rows [0:D] drive the class
        # columns, rows [D:2D] the box columns, row 2D is the fused bias.
        proj = w[idx]
        out = (jnp.dot(x_cls.astype(jnp.bfloat16), proj[:D, :],
                       preferred_element_type=jnp.float32)
               + jnp.dot(x_box.astype(jnp.bfloat16), proj[D:2 * D, :],
                         preferred_element_type=jnp.float32)
               + proj[2 * D:2 * D + 1, :].astype(jnp.float32))
        out_ref[...] = out.astype(out_ref.dtype)

    return kernel


# ----------------------------------------------------------------------------
# Parameter initialization (PyTorch-Linear-style uniform) + packing
# ----------------------------------------------------------------------------
def init_linear(key, in_dim, out_dim, dtype=jnp.float32):
    kw, kb = jax.random.split(key)
    bound = 1.0 / math.sqrt(in_dim)
    w = jax.random.uniform(kw, (in_dim, out_dim), dtype, -bound, bound)
    b = jax.random.uniform(kb, (1, out_dim), dtype, -bound, bound)
    return w, b


def init_block_params(key, feat_dim, in_dim, hidden):
    """12 arrays: map_t (3 linears) then map_s (3 linears), weights stored (in, out)."""
    keys = jax.random.split(key, 6)
    cat = feat_dim + in_dim
    wt1, bt1 = init_linear(keys[0], cat, hidden)
    wt2, bt2 = init_linear(keys[1], hidden, hidden)
    wt3, bt3 = init_linear(keys[2], hidden, in_dim)
    ws1, bs1 = init_linear(keys[3], cat, hidden)
    ws2, bs2 = init_linear(keys[4], hidden, hidden)
    ws3, bs3 = init_linear(keys[5], hidden, in_dim)
    return (wt1, bt1, wt2, bt2, wt3, bt3, ws1, bs1, ws2, bs2, ws3, bs3)


def init_model_params(key, *, input_dim, feature_dim, num_block, hidden_size,
                      num_classes):
    keys = jax.random.split(key, num_block + 4)
    params = {
        "blocks": [init_block_params(keys[i], feature_dim, input_dim, hidden_size)
                   for i in range(num_block)],
        # NOTE: the reference __init__ appends BOTH extra blocks to cls_module
        # (the second loop calls self.cls_module.append); box_module stays empty.
        "cls_module": [init_block_params(keys[num_block + i], feature_dim,
                                         input_dim, hidden_size)
                       for i in range(2)],
        "box_module": [],
    }
    cw, cb = init_linear(keys[num_block + 2], input_dim, num_classes)
    bw, bb = init_linear(keys[num_block + 3], input_dim, 4)
    params["class_w"], params["class_b"] = cw, cb
    params["box_w"], params["box_b"] = bw, bb
    return params


def _pad_rows(a, multiple=8):
    r = a.shape[0]
    rp = _round_up(r, multiple)
    if rp != r:
        a = jnp.pad(a, ((0, rp - r), (0, 0)))
    return a


def pack_block(p, dtype=jnp.bfloat16):
    """Repack one ResidualBlock into 3 bf16 slabs (weight rows + one bias row)."""
    wt1, bt1, wt2, bt2, wt3, bt3, ws1, bs1, ws2, bs2, ws3, bs3 = p
    H = wt2.shape[0]
    Dw = wt3.shape[1]
    # layer 1: fuse map_t / map_s along the output axis; input order stays [F | x].
    a1 = jnp.concatenate([jnp.concatenate([wt1, ws1], axis=1),
                          jnp.concatenate([bt1, bs1], axis=1)], axis=0)
    # layer 2: block-diagonal (t and s branches are independent).
    z = jnp.zeros((H, H), wt2.dtype)
    a2 = jnp.concatenate([jnp.block([[wt2, z], [z, ws2]]),
                          jnp.concatenate([bt2, bs2], axis=1)], axis=0)
    # layer 3: block-diagonal -> output cols [0:D] = t, [D:2D] = s.
    zd = jnp.zeros((H, Dw), wt3.dtype)
    a3 = jnp.concatenate([jnp.block([[wt3, zd], [zd, ws3]]),
                          jnp.concatenate([bt3, bs3], axis=1)], axis=0)
    return [_pad_rows(a).astype(dtype) for a in (a1, a2, a3)]


def pack_output_proj(class_w, class_b, box_w, box_b, dtype=jnp.bfloat16):
    """Fold both tiny projections + biases into one small slab."""
    D, nc = class_w.shape
    out_w = _round_up(nc + 4, 8)
    wc = jnp.zeros((D, out_w), class_w.dtype).at[:, :nc].set(class_w)
    wb = jnp.zeros((D, out_w), box_w.dtype).at[:, nc:nc + 4].set(box_w)
    bo = (jnp.zeros((1, out_w), class_b.dtype)
          .at[:, :nc].set(class_b)
          .at[:, nc:nc + 4].set(box_b))
    slab = _pad_rows(jnp.concatenate([wc, wb, bo], axis=0)).astype(dtype)
    return [slab], out_w


def pack_model_params(params, feature_dim):
    packed = []
    all_blocks = (list(params["blocks"]) + list(params["cls_module"])
                  + list(params["box_module"]))
    for bp in all_blocks:
        packed += pack_block(bp)
    proj, out_w = pack_output_proj(params["class_w"], params["class_b"],
                                   params["box_w"], params["box_b"])
    packed += proj
    meta = dict(
        num_main=len(params["blocks"]),
        num_cls=len(params["cls_module"]),
        num_box=len(params["box_module"]),
        num_classes=int(params["class_w"].shape[1]),
        feature_dim=int(feature_dim),
        input_dim=int(params["class_w"].shape[0]),
        hidden_size=int(all_blocks[0][2].shape[0]),
        out_w=int(out_w),
    )
    return packed, meta


# ----------------------------------------------------------------------------
# Forward pass (single fused pallas_call, row-tiled grid)
# ----------------------------------------------------------------------------
def _choose_tiling(M, tile_m_max=4096, min_steps=2):
    """Tile the row axis so that (a) per-step overhead is amortized, (b) padding
    never adds a whole garbage tile, and (c) the grid has >= min_steps steps so
    the 'parallel' axis can shard across v7x's two TensorCores."""
    M8 = _round_up(max(M, 8), 8)
    n_steps = max(_cdiv(M8, tile_m_max), min_steps if M8 >= 16 else 1)
    tile = _round_up(_cdiv(M8, n_steps), 8)
    n_steps = _cdiv(M8, tile)
    return tile, tile * n_steps, n_steps


def class_residual_net_forward(batched_inputs, packed, meta, *, tile_m_max=4096):
    F = jnp.stack([bi["encoding"] for bi in batched_inputs])          # (N, B, C)
    x = jnp.stack([bi["proposal_boxes"] for bi in batched_inputs])    # (N, B, D)
    x = x.astype(F.dtype)
    if F.ndim == 2:                                                   # N x C -> N x B x C
        F = jnp.broadcast_to(F[:, None, :], (F.shape[0], x.shape[1], F.shape[1]))
    N, B, C = F.shape
    D = x.shape[-1]
    H = meta["hidden_size"]
    nc = meta["num_classes"]
    OUT_W = meta["out_w"]
    M = N * B
    F_flat = F.reshape(M, C)
    x_flat = x.reshape(M, D)

    TILE_M, M_pad, n_steps = _choose_tiling(M, tile_m_max)
    if M_pad != M:
        F_flat = jnp.pad(F_flat, ((0, M_pad - M), (0, 0)))
        x_flat = jnp.pad(x_flat, ((0, M_pad - M), (0, 0)))

    kernel = make_fused_kernel(meta["num_main"], meta["num_cls"], meta["num_box"],
                               C, D, H)

    # Weight slabs: full-array blocks with constant index_map -> VMEM-resident,
    # never re-fetched across grid steps.
    w_specs = [pl.BlockSpec(tuple(w.shape), lambda i: (0, 0)) for w in packed]

    n_blocks = meta["num_main"] + meta["num_cls"] + meta["num_box"]
    macs_per_row = (n_blocks * ((C + D) * 2 * H + (2 * H) * (2 * H)
                                + (2 * H) * (2 * D))
                    + 2 * D * OUT_W)
    cost = pl.CostEstimate(
        flops=2 * M_pad * macs_per_row,
        transcendentals=M_pad * n_blocks * D,
        bytes_accessed=(M_pad * 4 * (C + D + OUT_W)
                        + sum(int(w.size) * w.dtype.itemsize for w in packed)),
    )

    out = pl.pallas_call(
        kernel,
        out_shape=jax.ShapeDtypeStruct((M_pad, OUT_W), jnp.float32),
        grid_spec=pltpu.PrefetchScalarGridSpec(
            num_scalar_prefetch=0,
            grid=(n_steps,),
            in_specs=[pl.BlockSpec((TILE_M, C), lambda i: (i, 0)),
                      pl.BlockSpec((TILE_M, D), lambda i: (i, 0))] + w_specs,
            out_specs=pl.BlockSpec((TILE_M, OUT_W), lambda i: (i, 0)),
            scratch_shapes=[pltpu.VMEM((TILE_M, C + D), jnp.bfloat16)],
        ),
        compiler_params=pltpu.CompilerParams(
            dimension_semantics=("parallel",),
            vmem_limit_bytes=48 * 1024 * 1024,   # v7x has only 64 MiB physical VMEM
        ),
        cost_estimate=cost,
    )(F_flat, x_flat, *packed)

    out = out[:M]
    logits = out[:, :nc].reshape(N, B, nc)
    boxes = out[:, nc:nc + 4].reshape(N, B, 4)

    results = []
    for i, bi in enumerate(batched_inputs):
        nb = dict(bi)
        nb["class_logits"] = logits[i]
        nb["pred_boxes"] = boxes[i]
        results.append(nb)
    return results


# ----------------------------------------------------------------------------
# Pure-JAX references
# ----------------------------------------------------------------------------
def packed_reference_forward(F_flat, x_flat, packed, meta):
    """Mirror of the fused kernel's math & precision (bf16 matmul operands,
    f32 accumulation) using the packed slabs — used for the tight check."""
    C, D, H = meta["feature_dim"], meta["input_dim"], meta["hidden_size"]
    nc = meta["num_classes"]
    CD, H2 = C + D, 2 * H
    f_bf = F_flat.astype(jnp.bfloat16)
    x = x_flat.astype(jnp.float32)

    def block(x_in, a1, a2, a3):
        fx = jnp.concatenate([f_bf, x_in.astype(jnp.bfloat16)], axis=-1)
        h = (jnp.dot(fx, a1[:CD], preferred_element_type=jnp.float32)
             + a1[CD:CD + 1].astype(jnp.float32))
        h = jnp.maximum(h, 0.0)
        h = (jnp.dot(h.astype(jnp.bfloat16), a2[:H2],
                     preferred_element_type=jnp.float32)
             + a2[H2:H2 + 1].astype(jnp.float32))
        h = jnp.maximum(h, 0.0)
        ts = (jnp.dot(h.astype(jnp.bfloat16), a3[:H2],
                      preferred_element_type=jnp.float32)
              + a3[H2:H2 + 1].astype(jnp.float32))
        t, s = ts[:, :D], jnp.clip(ts[:, D:2 * D], -2.0, 2.0)
        return (x_in - t) * jnp.exp(-s)

    idx = 0
    for _ in range(meta["num_main"]):
        x = block(x, packed[idx], packed[idx + 1], packed[idx + 2]); idx += 3
    x_cls = x
    x_box = x
    for _ in range(meta["num_cls"]):
        x_cls = block(x_cls, packed[idx], packed[idx + 1], packed[idx + 2]); idx += 3
    for _ in range(meta["num_box"]):
        x_box = block(x_box, packed[idx], packed[idx + 1], packed[idx + 2]); idx += 3
    proj = packed[idx]
    out = (jnp.dot(x_cls.astype(jnp.bfloat16), proj[:D],
                   preferred_element_type=jnp.float32)
           + jnp.dot(x_box.astype(jnp.bfloat16), proj[D:2 * D],
                     preferred_element_type=jnp.float32)
           + proj[2 * D:2 * D + 1].astype(jnp.float32))
    return out[:, :nc], out[:, nc:nc + 4]


def _ref_block(F, x, p):
    wt1, bt1, wt2, bt2, wt3, bt3, ws1, bs1, ws2, bs2, ws3, bs3 = p
    fx = jnp.concatenate([F, x], axis=-1)

    def mlp(w1, b1, w2, b2, w3, b3):
        h = jnp.maximum(fx @ w1 + b1, 0.0)
        h = jnp.maximum(h @ w2 + b2, 0.0)
        return h @ w3 + b3

    t = mlp(wt1, bt1, wt2, bt2, wt3, bt3)
    xn = x - t
    s = jnp.clip(mlp(ws1, bs1, ws2, bs2, ws3, bs3), -2.0, 2.0)
    return xn * jnp.exp(-s)


def reference_forward(batched_inputs, params):
    """Exact f32 semantics of the original PyTorch module."""
    F = jnp.stack([bi["encoding"] for bi in batched_inputs])
    x = jnp.stack([bi["proposal_boxes"] for bi in batched_inputs]).astype(F.dtype)
    N, B, C = F.shape
    Ff = F.reshape(N * B, C)
    xf = x.reshape(N * B, -1)
    for bp in params["blocks"]:
        xf = _ref_block(Ff, xf, bp)
    x_cls, x_box = xf, xf
    for bp in params["cls_module"]:
        x_cls = _ref_block(Ff, x_cls, bp)
    for bp in params["box_module"]:
        x_box = _ref_block(Ff, x_box, bp)
    logits = (x_cls @ params["class_w"] + params["class_b"]).reshape(N, B, -1)
    boxes = (x_box @ params["box_w"] + params["box_b"]).reshape(N, B, 4)
    return logits, boxes


# ----------------------------------------------------------------------------
if __name__ == "__main__":
    # Small config consistent with the module's forward:
    #   F: N x B x C (feature_dim), x: N x B x D (input_dim)
    N, B = 2, 8
    INPUT_DIM = 16       # D
    FEATURE_DIM = 32     # C
    HIDDEN_SIZE = 32
    NUM_BLOCK = 2
    NUM_CLASSES = 8

    key = jax.random.PRNGKey(0)
    k_params, k_f, k_x = jax.random.split(key, 3)

    params = init_model_params(
        k_params,
        input_dim=INPUT_DIM, feature_dim=FEATURE_DIM, num_block=NUM_BLOCK,
        hidden_size=HIDDEN_SIZE, num_classes=NUM_CLASSES,
    )
    # Pack once: bf16 slabs, fused layer-1, block-diagonal layers 2/3, bias rows,
    # single output-projection slab.
    packed, meta = pack_model_params(params, FEATURE_DIM)

    F_all = jax.random.normal(k_f, (N, B, FEATURE_DIM), jnp.float32)
    x_all = jax.random.normal(k_x, (N, B, INPUT_DIM), jnp.float32)

    batched_inputs = [
        {"encoding": F_all[i], "proposal_boxes": x_all[i]} for i in range(N)
    ]

    outputs = class_residual_net_forward(batched_inputs, packed, meta)
    logits = jnp.stack([o["class_logits"] for o in outputs])
    boxes = jnp.stack([o["pred_boxes"] for o in outputs])
    jax.block_until_ready((logits, boxes))

    assert logits.shape == (N, B, NUM_CLASSES)
    assert boxes.shape == (N, B, 4)

    # Tight check vs a pure-JAX mirror of the kernel's precision (bf16 operands).
    pk_logits, pk_boxes = packed_reference_forward(
        F_all.reshape(-1, FEATURE_DIM), x_all.reshape(-1, INPUT_DIM), packed, meta)
    pk_logits = pk_logits.reshape(N, B, NUM_CLASSES)
    pk_boxes = pk_boxes.reshape(N, B, 4)
    assert jnp.allclose(logits, pk_logits, rtol=2e-3, atol=2e-3)
    assert jnp.allclose(boxes, pk_boxes, rtol=2e-3, atol=2e-3)

    # Loose semantic check vs the exact f32 reference (tolerance is loose only
    # because the kernel intentionally feeds the MXU bf16 operands).
    ref_logits, ref_boxes = reference_forward(batched_inputs, params)
    assert jnp.allclose(logits, ref_logits, rtol=1e-1, atol=1e-1)
    assert jnp.allclose(boxes, ref_boxes, rtol=1e-1, atol=1e-1)

    print("KERNEL_OK")
</pallas_src>

<mosaic_0001>
module attributes {stable_mosaic.version = 11 : i64} {
  func.func @kernel(%arg0: i32, %arg1: memref<8x32xf32, #tpu.memory_space<vmem>>, %arg2: memref<8x16xf32, #tpu.memory_space<vmem>>, %arg3: memref<56x64xbf16, #tpu.memory_space<vmem>>, %arg4: memref<72x64xbf16, #tpu.memory_space<vmem>>, %arg5: memref<72x32xbf16, #tpu.memory_space<vmem>>, %arg6: memref<56x64xbf16, #tpu.memory_space<vmem>>, %arg7: memref<72x64xbf16, #tpu.memory_space<vmem>>, %arg8: memref<72x32xbf16, #tpu.memory_space<vmem>>, %arg9: memref<56x64xbf16, #tpu.memory_space<vmem>>, %arg10: memref<72x64xbf16, #tpu.memory_space<vmem>>, %arg11: memref<72x32xbf16, #tpu.memory_space<vmem>>, %arg12: memref<56x64xbf16, #tpu.memory_space<vmem>>, %arg13: memref<72x64xbf16, #tpu.memory_space<vmem>>, %arg14: memref<72x32xbf16, #tpu.memory_space<vmem>>, %arg15: memref<40x16xbf16, #tpu.memory_space<vmem>>, %arg16: memref<8x16xf32, #tpu.memory_space<vmem>>, %arg17: memref<8x48xbf16, #tpu.memory_space<vmem>>) attributes {dimension_semantics = [#tpu.dimension_semantics<parallel>], iteration_bounds = array<i64: 2>, scalar_prefetch = 0 : i64, scratch_operands = 1 : i64, tpu.core_type = #tpu.core_type<tc>, window_params = [{transform_indices = @transform_0, window_bounds = array<i64: 8, 32>}, {transform_indices = @transform_1, window_bounds = array<i64: 8, 16>}, {pipeline_mode = #tpu.pipeline_mode<synchronous>, transform_indices = @transform_2, window_bounds = array<i64: 56, 64>}, {pipeline_mode = #tpu.pipeline_mode<synchronous>, transform_indices = @transform_3, window_bounds = array<i64: 72, 64>}, {pipeline_mode = #tpu.pipeline_mode<synchronous>, transform_indices = @transform_4, window_bounds = array<i64: 72, 32>}, {pipeline_mode = #tpu.pipeline_mode<synchronous>, transform_indices = @transform_5, window_bounds = array<i64: 56, 64>}, {pipeline_mode = #tpu.pipeline_mode<synchronous>, transform_indices = @transform_6, window_bounds = array<i64: 72, 64>}, {pipeline_mode = #tpu.pipeline_mode<synchronous>, transform_indices = @transform_7, window_bounds = array<i64: 72, 32>}, {pipeline_mode = #tpu.pipeline_mode<synchronous>, transform_indices = @transform_8, window_bounds = array<i64: 56, 64>}, {pipeline_mode = #tpu.pipeline_mode<synchronous>, transform_indices = @transform_9, window_bounds = array<i64: 72, 64>}, {pipeline_mode = #tpu.pipeline_mode<synchronous>, transform_indices = @transform_10, window_bounds = array<i64: 72, 32>}, {pipeline_mode = #tpu.pipeline_mode<synchronous>, transform_indices = @transform_11, window_bounds = array<i64: 56, 64>}, {pipeline_mode = #tpu.pipeline_mode<synchronous>, transform_indices = @transform_12, window_bounds = array<i64: 72, 64>}, {pipeline_mode = #tpu.pipeline_mode<synchronous>, transform_indices = @transform_13, window_bounds = array<i64: 72, 32>}, {pipeline_mode = #tpu.pipeline_mode<synchronous>, transform_indices = @transform_14, window_bounds = array<i64: 40, 16>}, {transform_indices = @transform_15, window_bounds = array<i64: 8, 16>}]} {
    %c0 = arith.constant 0 : index
    %c0_0 = arith.constant 0 : index
    %0 = vector.load %arg1[%c0, %c0_0] : memref<8x32xf32, #tpu.memory_space<vmem>>, vector<8x32xf32>
    %1 = arith.truncf %0 : vector<8x32xf32> to vector<8x32xbf16>
    %c0_1 = arith.constant 0 : index
    %c0_2 = arith.constant 0 : index
    %2 = vector.load %arg17[%c0_1, %c0_2] : memref<8x48xbf16, #tpu.memory_space<vmem>>, vector<8x32xbf16>
    tpu.vector_store %arg17[%c0_1, %c0_2], %1 {strides = array<i32>} : memref<8x48xbf16, #tpu.memory_space<vmem>>, vector<8x32xbf16>,
    %c0_3 = arith.constant 0 : index
    %c0_4 = arith.constant 0 : index
    %3 = vector.load %arg2[%c0_3, %c0_4] : memref<8x16xf32, #tpu.memory_space<vmem>>, vector<8x16xf32>
    %4 = arith.truncf %3 : vector<8x16xf32> to vector<8x16xbf16>
    %c0_5 = arith.constant 0 : index
    %c32 = arith.constant 32 : index
    %5 = vector.load %arg17[%c0_5, %c32] : memref<8x48xbf16, #tpu.memory_space<vmem>>, vector<8x16xbf16>
    tpu.vector_store %arg17[%c0_5, %c32], %4 {strides = array<i32>} : memref<8x48xbf16, #tpu.memory_space<vmem>>, vector<8x16xbf16>,
    %c0_6 = arith.constant 0 : index
    %c0_7 = arith.constant 0 : index
    %6 = vector.load %arg17[%c0_6, %c0_7] : memref<8x48xbf16, #tpu.memory_space<vmem>>, vector<8x48xbf16>
    %c0_8 = arith.constant 0 : index
    %c0_9 = arith.constant 0 : index
    %7 = vector.load %arg3[%c0_8, %c0_9] : memref<56x64xbf16, #tpu.memory_space<vmem>>, vector<48x64xbf16>
    %cst = arith.constant dense<0.000000e+00> : vector<8x64xf32>
    %8 = tpu.matmul %6, %7, %cst {dimension_numbers = #tpu.dot_dimension_numbers<[1], [0], [0], [1], [0, 0, 1, 1], [], []>} : vector<8x48xbf16>, vector<48x64xbf16>, vector<8x64xf32> -> vector<8x64xf32>
    %c48 = arith.constant 48 : index
    %c0_10 = arith.constant 0 : index
    %9 = vector.load %arg3[%c48, %c0_10] : memref<56x64xbf16, #tpu.memory_space<vmem>>, vector<1x64xbf16>
    %10 = arith.extf %9 : vector<1x64xbf16> to vector<1x64xf32>
    %11 = vector.broadcast %10 : vector<1x64xf32> to vector<8x64xf32>
    %12 = arith.addf %8, %11 : vector<8x64xf32>
    %cst_11 = arith.constant 0.000000e+00 : f32
    %13 = vector.broadcast %cst_11 : f32 to vector<8x64xf32>
    %14 = arith.maximumf %12, %13 : vector<8x64xf32>
    %15 = arith.truncf %14 : vector<8x64xf32> to vector<8x64xbf16>
    %c0_12 = arith.constant 0 : index
    %c0_13 = arith.constant 0 : index
    %16 = vector.load %arg4[%c0_12, %c0_13] : memref<72x64xbf16, #tpu.memory_space<vmem>>, vector<64x64xbf16>
    %cst_14 = arith.constant dense<0.000000e+00> : vector<8x64xf32>
    %17 = tpu.matmul %15, %16, %cst_14 {dimension_numbers = #tpu.dot_dimension_numbers<[1], [0], [0], [1], [0, 0, 1, 1], [], []>} : vector<8x64xbf16>, vector<64x64xbf16>, vector<8x64xf32> -> vector<8x64xf32>
    %c64 = arith.constant 64 : index
    %c0_15 = arith.constant 0 : index
    %18 = vector.load %arg4[%c64, %c0_15] : memref<72x64xbf16, #tpu.memory_space<vmem>>, vector<1x64xbf16>
    %19 = arith.extf %18 : vector<1x64xbf16> to vector<1x64xf32>
    %20 = vector.broadcast %19 : vector<1x64xf32> to vector<8x64xf32>
    %21 = arith.addf %17, %20 : vector<8x64xf32>
    %cst_16 = arith.constant 0.000000e+00 : f32
    %22 = vector.broadcast %cst_16 : f32 to vector<8x64xf32>
    %23 = arith.maximumf %21, %22 : vector<8x64xf32>
    %24 = arith.truncf %23 : vector<8x64xf32> to vector<8x64xbf16>
    %c0_17 = arith.constant 0 : index
    %c0_18 = arith.constant 0 : index
    %25 = vector.load %arg5[%c0_17, %c0_18] : memref<72x32xbf16, #tpu.memory_space<vmem>>, vector<64x32xbf16>
    %cst_19 = arith.constant dense<0.000000e+00> : vector<8x32xf32>
    %26 = tpu.matmul %24, %25, %cst_19 {dimension_numbers = #tpu.dot_dimension_numbers<[1], [0], [0], [1], [0, 0, 1, 1], [], []>} : vector<8x64xbf16>, vector<64x32xbf16>, vector<8x32xf32> -> vector<8x32xf32>
    %c64_20 = arith.constant 64 : index
    %c0_21 = arith.constant 0 : index
    %27 = vector.load %arg5[%c64_20, %c0_21] : memref<72x32xbf16, #tpu.memory_space<vmem>>, vector<1x32xbf16>
    %28 = arith.extf %27 : vector<1x32xbf16> to vector<1x32xf32>
    %29 = vector.broadcast %28 : vector<1x32xf32> to vector<8x32xf32>
    %30 = arith.addf %26, %29 : vector<8x32xf32>
    %31 = vector.extract_strided_slice %30 {offsets = [0, 0], sizes = [8, 16], strides = [1, 1]} : vector<8x32xf32> to vector<8x16xf32>
    %32 = vector.extract_strided_slice %30 {offsets = [0, 16], sizes = [8, 16], strides = [1, 1]} : vector<8x32xf32> to vector<8x16xf32>
    %cst_22 = arith.constant -2.000000e+00 : f32
    %cst_23 = arith.constant 2.000000e+00 : f32
    %33 = vector.broadcast %cst_22 : f32 to vector<8x16xf32>
    %34 = arith.maximumf %33, %32 : vector<8x16xf32>
    %35 = vector.broadcast %cst_23 : f32 to vector<8x16xf32>
    %36 = arith.minimumf %35, %34 : vector<8x16xf32>
    %37 = arith.subf %3, %31 : vector<8x16xf32>
    %cst_24 = arith.constant 0.000000e+00 : f32
    %38 = vector.broadcast %cst_24 : f32 to vector<8x16xf32>
    %39 = arith.subf %38, %36 : vector<8x16xf32>
    %40 = math.exp %39 : vector<8x16xf32>
    %41 = arith.mulf %37, %40 : vector<8x16xf32>
    %42 = arith.truncf %41 : vector<8x16xf32> to vector<8x16xbf16>
    %c0_25 = arith.constant 0 : index
    %c32_26 = arith.constant 32 : index
    %43 = vector.load %arg17[%c0_25, %c32_26] : memref<8x48xbf16, #tpu.memory_space<vmem>>, vector<8x16xbf16>
    tpu.vector_store %arg17[%c0_25, %c32_26], %42 {strides = array<i32>} : memref<8x48xbf16, #tpu.memory_space<vmem>>, vector<8x16xbf16>,
    %c0_27 = arith.constant 0 : index
    %c0_28 = arith.constant 0 : index
    %44 = vector.load %arg17[%c0_27, %c0_28] : memref<8x48xbf16, #tpu.memory_space<vmem>>, vector<8x48xbf16>
    %c0_29 = arith.constant 0 : index
    %c0_30 = arith.constant 0 : index
    %45 = vector.load %arg6[%c0_29, %c0_30] : memref<56x64xbf16, #tpu.memory_space<vmem>>, vector<48x64xbf16>
    %cst_31 = arith.constant dense<0.000000e+00> : vector<8x64xf32>
    %46 = tpu.matmul %44, %45, %cst_31 {dimension_numbers = #tpu.dot_dimension_numbers<[1], [0], [0], [1], [0, 0, 1, 1], [], []>} : vector<8x48xbf16>, vector<48x64xbf16>, vector<8x64xf32> -> vector<8x64xf32>
    %c48_32 = arith.constant 48 : index
    %c0_33 = arith.constant 0 : index
    %47 = vector.load %arg6[%c48_32, %c0_33] : memref<56x64xbf16, #tpu.memory_space<vmem>>, vector<1x64xbf16>
    %48 = arith.extf %47 : vector<1x64xbf16> to vector<1x64xf32>
    %49 = vector.broadcast %48 : vector<1x64xf32> to vector<8x64xf32>
    %50 = arith.addf %46, %49 : vector<8x64xf32>
    %cst_34 = arith.constant 0.000000e+00 : f32
    %51 = vector.broadcast %cst_34 : f32 to vector<8x64xf32>
    %52 = arith.maximumf %50, %51 : vector<8x64xf32>
    %53 = arith.truncf %52 : vector<8x64xf32> to vector<8x64xbf16>
    %c0_35 = arith.constant 0 : index
    %c0_36 = arith.constant 0 : index
    %54 = vector.load %arg7[%c0_35, %c0_36] : memref<72x64xbf16, #tpu.memory_space<vmem>>, vector<64x64xbf16>
    %cst_37 = arith.constant dense<0.000000e+00> : vector<8x64xf32>
    %55 = tpu.matmul %53, %54, %cst_37 {dimension_numbers = #tpu.dot_dimension_numbers<[1], [0], [0], [1], [0, 0, 1, 1], [], []>} : vector<8x64xbf16>, vector<64x64xbf16>, vector<8x64xf32> -> vector<8x64xf32>
    %c64_38 = arith.constant 64 : index
    %c0_39 = arith.constant 0 : index
    %56 = vector.load %arg7[%c64_38, %c0_39] : memref<72x64xbf16, #tpu.memory_space<vmem>>, vector<1x64xbf16>
    %57 = arith.extf %56 : vector<1x64xbf16> to vector<1x64xf32>
    %58 = vector.broadcast %57 : vector<1x64xf32> to vector<8x64xf32>
    %59 = arith.addf %55, %58 : vector<8x64xf32>
    %cst_40 = arith.constant 0.000000e+00 : f32
    %60 = vector.broadcast %cst_40 : f32 to vector<8x64xf32>
    %61 = arith.maximumf %59, %60 : vector<8x64xf32>
    %62 = arith.truncf %61 : vector<8x64xf32> to vector<8x64xbf16>
    %c0_41 = arith.constant 0 : index
    %c0_42 = arith.constant 0 : index
    %63 = vector.load %arg8[%c0_41, %c0_42] : memref<72x32xbf16, #tpu.memory_space<vmem>>, vector<64x32xbf16>
    %cst_43 = arith.constant dense<0.000000e+00> : vector<8x32xf32>
    %64 = tpu.matmul %62, %63, %cst_43 {dimension_numbers = #tpu.dot_dimension_numbers<[1], [0], [0], [1], [0, 0, 1, 1], [], []>} : vector<8x64xbf16>, vector<64x32xbf16>, vector<8x32xf32> -> vector<8x32xf32>
    %c64_44 = arith.constant 64 : index
    %c0_45 = arith.constant 0 : index
    %65 = vector.load %arg8[%c64_44, %c0_45] : memref<72x32xbf16, #tpu.memory_space<vmem>>, vector<1x32xbf16>
    %66 = arith.extf %65 : vector<1x32xbf16> to vector<1x32xf32>
    %67 = vector.broadcast %66 : vector<1x32xf32> to vector<8x32xf32>
    %68 = arith.addf %64, %67 : vector<8x32xf32>
    %69 = vector.extract_strided_slice %68 {offsets = [0, 0], sizes = [8, 16], strides = [1, 1]} : vector<8x32xf32> to vector<8x16xf32>
    %70 = vector.extract_strided_slice %68 {offsets = [0, 16], sizes = [8, 16], strides = [1, 1]} : vector<8x32xf32> to vector<8x16xf32>
    %cst_46 = arith.constant -2.000000e+00 : f32
    %cst_47 = arith.constant 2.000000e+00 : f32
    %71 = vector.broadcast %cst_46 : f32 to vector<8x16xf32>
    %72 = arith.maximumf %71, %70 : vector<8x16xf32>
    %73 = vector.broadcast %cst_47 : f32 to vector<8x16xf32>
    %74 = arith.minimumf %73, %72 : vector<8x16xf32>
    %75 = arith.subf %41, %69 : vector<8x16xf32>
    %cst_48 = arith.constant 0.000000e+00 : f32
    %76 = vector.broadcast %cst_48 : f32 to vector<8x16xf32>
    %77 = arith.subf %76, %74 : vector<8x16xf32>
    %78 = math.exp %77 : vector<8x16xf32>
    %79 = arith.mulf %75, %78 : vector<8x16xf32>
    %80 = arith.truncf %79 : vector<8x16xf32> to vector<8x16xbf16>
    %c0_49 = arith.constant 0 : index
    %c32_50 = arith.constant 32 : index
    %81 = vector.load %arg17[%c0_49, %c32_50] : memref<8x48xbf16, #tpu.memory_space<vmem>>, vector<8x16xbf16>
    tpu.vector_store %arg17[%c0_49, %c32_50], %80 {strides = array<i32>} : memref<8x48xbf16, #tpu.memory_space<vmem>>, vector<8x16xbf16>,
    %c0_51 = arith.constant 0 : index
    %c0_52 = arith.constant 0 : index
    %82 = vector.load %arg17[%c0_51, %c0_52] : memref<8x48xbf16, #tpu.memory_space<vmem>>, vector<8x48xbf16>
    %c0_53 = arith.constant 0 : index
    %c0_54 = arith.constant 0 : index
    %83 = vector.load %arg9[%c0_53, %c0_54] : memref<56x64xbf16, #tpu.memory_space<vmem>>, vector<48x64xbf16>
    %cst_55 = arith.constant dense<0.000000e+00> : vector<8x64xf32>
    %84 = tpu.matmul %82, %83, %cst_55 {dimension_numbers = #tpu.dot_dimension_numbers<[1], [0], [0], [1], [0, 0, 1, 1], [], []>} : vector<8x48xbf16>, vector<48x64xbf16>, vector<8x64xf32> -> vector<8x64xf32>
    %c48_56 = arith.constant 48 : index
    %c0_57 = arith.constant 0 : index
    %85 = vector.load %arg9[%c48_56, %c0_57] : memref<56x64xbf16, #tpu.memory_space<vmem>>, vector<1x64xbf16>
    %86 = arith.extf %85 : vector<1x64xbf16> to vector<1x64xf32>
    %87 = vector.broadcast %86 : vector<1x64xf32> to vector<8x64xf32>
    %88 = arith.addf %84, %87 : vector<8x64xf32>
    %cst_58 = arith.constant 0.000000e+00 : f32
    %89 = vector.broadcast %cst_58 : f32 to vector<8x64xf32>
    %90 = arith.maximumf %88, %89 : vector<8x64xf32>
    %91 = arith.truncf %90 : vector<8x64xf32> to vector<8x64xbf16>
    %c0_59 = arith.constant 0 : index
    %c0_60 = arith.constant 0 : index
    %92 = vector.load %arg10[%c0_59, %c0_60] : memref<72x64xbf16, #tpu.memory_space<vmem>>, vector<64x64xbf16>
    %cst_61 = arith.constant dense<0.000000e+00> : vector<8x64xf32>
    %93 = tpu.matmul %91, %92, %cst_61 {dimension_numbers = #tpu.dot_dimension_numbers<[1], [0], [0], [1], [0, 0, 1, 1], [], []>} : vector<8x64xbf16>, vector<64x64xbf16>, vector<8x64xf32> -> vector<8x64xf32>
    %c64_62 = arith.constant 64 : index
    %c0_63 = arith.constant 0 : index
    %94 = vector.load %arg10[%c64_62, %c0_63] : memref<72x64xbf16, #tpu.memory_space<vmem>>, vector<1x64xbf16>
    %95 = arith.extf %94 : vector<1x64xbf16> to vector<1x64xf32>
    %96 = vector.broadcast %95 : vector<1x64xf32> to vector<8x64xf32>
    %97 = arith.addf %93, %96 : vector<8x64xf32>
    %cst_64 = arith.constant 0.000000e+00 : f32
    %98 = vector.broadcast %cst_64 : f32 to vector<8x64xf32>
    %99 = arith.maximumf %97, %98 : vector<8x64xf32>
    %100 = arith.truncf %99 : vector<8x64xf32> to vector<8x64xbf16>
    %c0_65 = arith.constant 0 : index
    %c0_66 = arith.constant 0 : index
    %101 = vector.load %arg11[%c0_65, %c0_66] : memref<72x32xbf16, #tpu.memory_space<vmem>>, vector<64x32xbf16>
    %cst_67 = arith.constant dense<0.000000e+00> : vector<8x32xf32>
    %102 = tpu.matmul %100, %101, %cst_67 {dimension_numbers = #tpu.dot_dimension_numbers<[1], [0], [0], [1], [0, 0, 1, 1], [], []>} : vector<8x64xbf16>, vector<64x32xbf16>, vector<8x32xf32> -> vector<8x32xf32>
    %c64_68 = arith.constant 64 : index
    %c0_69 = arith.constant 0 : index
    %103 = vector.load %arg11[%c64_68, %c0_69] : memref<72x32xbf16, #tpu.memory_space<vmem>>, vector<1x32xbf16>
    %104 = arith.extf %103 : vector<1x32xbf16> to vector<1x32xf32>
    %105 = vector.broadcast %104 : vector<1x32xf32> to vector<8x32xf32>
    %106 = arith.addf %102, %105 : vector<8x32xf32>
    %107 = vector.extract_strided_slice %106 {offsets = [0, 0], sizes = [8, 16], strides = [1, 1]} : vector<8x32xf32> to vector<8x16xf32>
    %108 = vector.extract_strided_slice %106 {offsets = [0, 16], sizes = [8, 16], strides = [1, 1]} : vector<8x32xf32> to vector<8x16xf32>
    %cst_70 = arith.constant -2.000000e+00 : f32
    %cst_71 = arith.constant 2.000000e+00 : f32
    %109 = vector.broadcast %cst_70 : f32 to vector<8x16xf32>
    %110 = arith.maximumf %109, %108 : vector<8x16xf32>
    %111 = vector.broadcast %cst_71 : f32 to vector<8x16xf32>
    %112 = arith.minimumf %111, %110 : vector<8x16xf32>
    %113 = arith.subf %79, %107 : vector<8x16xf32>
    %cst_72 = arith.constant 0.000000e+00 : f32
    %114 = vector.broadcast %cst_72 : f32 to vector<8x16xf32>
    %115 = arith.subf %114, %112 : vector<8x16xf32>
    %116 = math.exp %115 : vector<8x16xf32>
    %117 = arith.mulf %113, %116 : vector<8x16xf32>
    %118 = arith.truncf %117 : vector<8x16xf32> to vector<8x16xbf16>
    %c0_73 = arith.constant 0 : index
    %c32_74 = arith.constant 32 : index
    %119 = vector.load %arg17[%c0_73, %c32_74] : memref<8x48xbf16, #tpu.memory_space<vmem>>, vector<8x16xbf16>
    tpu.vector_store %arg17[%c0_73, %c32_74], %118 {strides = array<i32>} : memref<8x48xbf16, #tpu.memory_space<vmem>>, vector<8x16xbf16>,
    %c0_75 = arith.constant 0 : index
    %c0_76 = arith.constant 0 : index
    %120 = vector.load %arg17[%c0_75, %c0_76] : memref<8x48xbf16, #tpu.memory_space<vmem>>, vector<8x48xbf16>
    %c0_77 = arith.constant 0 : index
    %c0_78 = arith.constant 0 : index
    %121 = vector.load %arg12[%c0_77, %c0_78] : memref<56x64xbf16, #tpu.memory_space<vmem>>, vector<48x64xbf16>
    %cst_79 = arith.constant dense<0.000000e+00> : vector<8x64xf32>
    %122 = tpu.matmul %120, %121, %cst_79 {dimension_numbers = #tpu.dot_dimension_numbers<[1], [0], [0], [1], [0, 0, 1, 1], [], []>} : vector<8x48xbf16>, vector<48x64xbf16>, vector<8x64xf32> -> vector<8x64xf32>
    %c48_80 = arith.constant 48 : index
    %c0_81 = arith.constant 0 : index
    %123 = vector.load %arg12[%c48_80, %c0_81] : memref<56x64xbf16, #tpu.memory_space<vmem>>, vector<1x64xbf16>
    %124 = arith.extf %123 : vector<1x64xbf16> to vector<1x64xf32>
    %125 = vector.broadcast %124 : vector<1x64xf32> to vector<8x64xf32>
    %126 = arith.addf %122, %125 : vector<8x64xf32>
    %cst_82 = arith.constant 0.000000e+00 : f32
    %127 = vector.broadcast %cst_82 : f32 to vector<8x64xf32>
    %128 = arith.maximumf %126, %127 : vector<8x64xf32>
    %129 = arith.truncf %128 : vector<8x64xf32> to vector<8x64xbf16>
    %c0_83 = arith.constant 0 : index
    %c0_84 = arith.constant 0 : index
    %130 = vector.load %arg13[%c0_83, %c0_84] : memref<72x64xbf16, #tpu.memory_space<vmem>>, vector<64x64xbf16>
    %cst_85 = arith.constant dense<0.000000e+00> : vector<8x64xf32>
    %131 = tpu.matmul %129, %130, %cst_85 {dimension_numbers = #tpu.dot_dimension_numbers<[1], [0], [0], [1], [0, 0, 1, 1], [], []>} : vector<8x64xbf16>, vector<64x64xbf16>, vector<8x64xf32> -> vector<8x64xf32>
    %c64_86 = arith.constant 64 : index
    %c0_87 = arith.constant 0 : index
    %132 = vector.load %arg13[%c64_86, %c0_87] : memref<72x64xbf16, #tpu.memory_space<vmem>>, vector<1x64xbf16>
    %133 = arith.extf %132 : vector<1x64xbf16> to vector<1x64xf32>
    %134 = vector.broadcast %133 : vector<1x64xf32> to vector<8x64xf32>
    %135 = arith.addf %131, %134 : vector<8x64xf32>
    %cst_88 = arith.constant 0.000000e+00 : f32
    %136 = vector.broadcast %cst_88 : f32 to vector<8x64xf32>
    %137 = arith.maximumf %135, %136 : vector<8x64xf32>
    %138 = arith.truncf %137 : vector<8x64xf32> to vector<8x64xbf16>
    %c0_89 = arith.constant 0 : index
    %c0_90 = arith.constant 0 : index
    %139 = vector.load %arg14[%c0_89, %c0_90] : memref<72x32xbf16, #tpu.memory_space<vmem>>, vector<64x32xbf16>
    %cst_91 = arith.constant dense<0.000000e+00> : vector<8x32xf32>
    %140 = tpu.matmul %138, %139, %cst_91 {dimension_numbers = #tpu.dot_dimension_numbers<[1], [0], [0], [1], [0, 0, 1, 1], [], []>} : vector<8x64xbf16>, vector<64x32xbf16>, vector<8x32xf32> -> vector<8x32xf32>
    %c64_92 = arith.constant 64 : index
    %c0_93 = arith.constant 0 : index
    %141 = vector.load %arg14[%c64_92, %c0_93] : memref<72x32xbf16, #tpu.memory_space<vmem>>, vector<1x32xbf16>
    %142 = arith.extf %141 : vector<1x32xbf16> to vector<1x32xf32>
    %143 = vector.broadcast %142 : vector<1x32xf32> to vector<8x32xf32>
    %144 = arith.addf %140, %143 : vector<8x32xf32>
    %145 = vector.extract_strided_slice %144 {offsets = [0, 0], sizes = [8, 16], strides = [1, 1]} : vector<8x32xf32> to vector<8x16xf32>
    %146 = vector.extract_strided_slice %144 {offsets = [0, 16], sizes = [8, 16], strides = [1, 1]} : vector<8x32xf32> to vector<8x16xf32>
    %cst_94 = arith.constant -2.000000e+00 : f32
    %cst_95 = arith.constant 2.000000e+00 : f32
    %147 = vector.broadcast %cst_94 : f32 to vector<8x16xf32>
    %148 = arith.maximumf %147, %146 : vector<8x16xf32>
    %149 = vector.broadcast %cst_95 : f32 to vector<8x16xf32>
    %150 = arith.minimumf %149, %148 : vector<8x16xf32>
    %151 = arith.subf %117, %145 : vector<8x16xf32>
    %cst_96 = arith.constant 0.000000e+00 : f32
    %152 = vector.broadcast %cst_96 : f32 to vector<8x16xf32>
    %153 = arith.subf %152, %150 : vector<8x16xf32>
    %154 = math.exp %153 : vector<8x16xf32>
    %155 = arith.mulf %151, %154 : vector<8x16xf32>
    %156 = arith.truncf %155 : vector<8x16xf32> to vector<8x16xbf16>
    %c0_97 = arith.constant 0 : index
    %c0_98 = arith.constant 0 : index
    %157 = vector.load %arg15[%c0_97, %c0_98] : memref<40x16xbf16, #tpu.memory_space<vmem>>, vector<16x16xbf16>
    %cst_99 = arith.constant dense<0.000000e+00> : vector<8x16xf32>
    %158 = tpu.matmul %156, %157, %cst_99 {dimension_numbers = #tpu.dot_dimension_numbers<[1], [0], [0], [1], [0, 0, 1, 1], [], []>} : vector<8x16xbf16>, vector<16x16xbf16>, vector<8x16xf32> -> vector<8x16xf32>
    %159 = arith.truncf %79 : vector<8x16xf32> to vector<8x16xbf16>
    %c16 = arith.constant 16 : index
    %c0_100 = arith.constant 0 : index
    %160 = vector.load %arg15[%c16, %c0_100] : memref<40x16xbf16, #tpu.memory_space<vmem>>, vector<16x16xbf16>
    %cst_101 = arith.constant dense<0.000000e+00> : vector<8x16xf32>
    %161 = tpu.matmul %159, %160, %cst_101 {dimension_numbers = #tpu.dot_dimension_numbers<[1], [0], [0], [1], [0, 0, 1, 1], [], []>} : vector<8x16xbf16>, vector<16x16xbf16>, vector<8x16xf32> -> vector<8x16xf32>
    %162 = arith.addf %158, %161 : vector<8x16xf32>
    %c32_102 = arith.constant 32 : index
    %c0_103 = arith.constant 0 : index
    %163 = vector.load %arg15[%c32_102, %c0_103] : memref<40x16xbf16, #tpu.memory_space<vmem>>, vector<1x16xbf16>
    %164 = arith.extf %163 : vector<1x16xbf16> to vector<1x16xf32>
    %165 = vector.broadcast %164 : vector<1x16xf32> to vector<8x16xf32>
    %166 = arith.addf %162, %165 : vector<8x16xf32>
    %c0_104 = arith.constant 0 : index
    %c0_105 = arith.constant 0 : index
    %167 = vector.load %arg16[%c0_104, %c0_105] : memref<8x16xf32, #tpu.memory_space<vmem>>, vector<8x16xf32>
    tpu.vector_store %arg16[%c0_104, %c0_105], %166 {strides = array<i32>} : memref<8x16xf32, #tpu.memory_space<vmem>>, vector<8x16xf32>,
    return
  }
  func.func @transform_0(%arg0: i32) -> (i32, i32) {
    %c0_i32 = arith.constant 0 : i32
    %c0_i32_0 = arith.constant 0 : i32
    return %arg0, %c0_i32 : i32, i32
  }
  func.func @transform_1(%arg0: i32) -> (i32, i32) {
    %c0_i32 = arith.constant 0 : i32
    %c0_i32_0 = arith.constant 0 : i32
    return %arg0, %c0_i32 : i32, i32
  }
  func.func @transform_2(%arg0: i32) -> (i32, i32) {
    %c0_i32 = arith.constant 0 : i32
    %c0_i32_0 = arith.constant 0 : i32
    %c0_i32_1 = arith.constant 0 : i32
    return %c0_i32, %c0_i32_0 : i32, i32
  }
  func.func @transform_3(%arg0: i32) -> (i32, i32) {
    %c0_i32 = arith.constant 0 : i32
    %c0_i32_0 = arith.constant 0 : i32
    %c0_i32_1 = arith.constant 0 : i32
    return %c0_i32, %c0_i32_0 : i32, i32
  }
  func.func @transform_4(%arg0: i32) -> (i32, i32) {
    %c0_i32 = arith.constant 0 : i32
    %c0_i32_0 = arith.constant 0 : i32
    %c0_i32_1 = arith.constant 0 : i32
    return %c0_i32, %c0_i32_0 : i32, i32
  }
  func.func @transform_5(%arg0: i32) -> (i32, i32) {
    %c0_i32 = arith.constant 0 : i32
    %c0_i32_0 = arith.constant 0 : i32
    %c0_i32_1 = arith.constant 0 : i32
    return %c0_i32, %c0_i32_0 : i32, i32
  }
  func.func @transform_6(%arg0: i32) -> (i32, i32) {
    %c0_i32 = arith.constant 0 : i32
    %c0_i32_0 = arith.constant 0 : i32
    %c0_i32_1 = arith.constant 0 : i32
    return %c0_i32, %c0_i32_0 : i32, i32
  }
  func.func @transform_7(%arg0: i32) -> (i32, i32) {
    %c0_i32 = arith.constant 0 : i32
    %c0_i32_0 = arith.constant 0 : i32
    %c0_i32_1 = arith.constant 0 : i32
    return %c0_i32, %c0_i32_0 : i32, i32
  }
  func.func @transform_8(%arg0: i32) -> (i32, i32) {
    %c0_i32 = arith.constant 0 : i32
    %c0_i32_0 = arith.constant 0 : i32
    %c0_i32_1 = arith.constant 0 : i32
    return %c0_i32, %c0_i32_0 : i32, i32
  }
  func.func @transform_9(%arg0: i32) -> (i32, i32) {
    %c0_i32 = arith.constant 0 : i32
    %c0_i32_0 = arith.constant 0 : i32
    %c0_i32_1 = arith.constant 0 : i32
    return %c0_i32, %c0_i32_0 : i32, i32
  }
  func.func @transform_10(%arg0: i32) -> (i32, i32) {
    %c0_i32 = arith.constant 0 : i32
    %c0_i32_0 = arith.constant 0 : i32
    %c0_i32_1 = arith.constant 0 : i32
    return %c0_i32, %c0_i32_0 : i32, i32
  }
  func.func @transform_11(%arg0: i32) -> (i32, i32) {
    %c0_i32 = arith.constant 0 : i32
    %c0_i32_0 = arith.constant 0 : i32
    %c0_i32_1 = arith.constant 0 : i32
    return %c0_i32, %c0_i32_0 : i32, i32
  }
  func.func @transform_12(%arg0: i32) -> (i32, i32) {
    %c0_i32 = arith.constant 0 : i32
    %c0_i32_0 = arith.constant 0 : i32
    %c0_i32_1 = arith.constant 0 : i32
    return %c0_i32, %c0_i32_0 : i32, i32
  }
  func.func @transform_13(%arg0: i32) -> (i32, i32) {
    %c0_i32 = arith.constant 0 : i32
    %c0_i32_0 = arith.constant 0 : i32
    %c0_i32_1 = arith.constant 0 : i32
    return %c0_i32, %c0_i32_0 : i32, i32
  }
  func.func @transform_14(%arg0: i32) -> (i32, i32) {
    %c0_i32 = arith.constant 0 : i32
    %c0_i32_0 = arith.constant 0 : i32
    %c0_i32_1 = arith.constant 0 : i32
    return %c0_i32, %c0_i32_0 : i32, i32
  }
  func.func @transform_15(%arg0: i32) -> (i32, i32) {
    %c0_i32 = arith.constant 0 : i32
    %c0_i32_0 = arith.constant 0 : i32
    return %arg0, %c0_i32 : i32, i32
  }
}

</mosaic_0001>

<llo_original>
// kernel: tpu_custom_call.1
$region0: #{tpu_custom_call.1}
  #allocation0 [shape = 'u32[]', space=smem, size = 0x4, offset = 0x4, fixed_abs, tag = 'smem constant byte address 0x4 - core index']
  #allocation1 [shape = 'u32[144,128]{1,0:T(1,128)}', space=vmem, size = 0x12000, scoped, tag = 'internal scratch']
  #allocation2 [shape = 'bf16[8,48]{1,0:T(8,128)(2,1)}', space=vmem, size = 0x800, scoped, tag = 'scratch operand']
  %s0 = inlined_call_operand.vmem [shape: f32[16,32], index: 0, kind: input, shape index: {}]
  %s1 = inlined_call_operand.vmem [shape: f32[16,16], index: 1, kind: input, shape index: {}]
  %s2 = inlined_call_operand.vmem [shape: bf16[56,64], index: 2, kind: input, shape index: {}]
  %s3 = inlined_call_operand.vmem [shape: bf16[72,64], index: 3, kind: input, shape index: {}]
  %s4 = inlined_call_operand.vmem [shape: bf16[72,32], index: 4, kind: input, shape index: {}]
  %s5 = inlined_call_operand.vmem [shape: bf16[56,64], index: 5, kind: input, shape index: {}]
  %s6 = inlined_call_operand.vmem [shape: bf16[72,64], index: 6, kind: input, shape index: {}]
  %s7 = inlined_call_operand.vmem [shape: bf16[72,32], index: 7, kind: input, shape index: {}]
  %s8 = inlined_call_operand.vmem [shape: bf16[56,64], index: 8, kind: input, shape index: {}]
  %s9 = inlined_call_operand.vmem [shape: bf16[72,64], index: 9, kind: input, shape index: {}]
  %s10 = inlined_call_operand.vmem [shape: bf16[72,32], index: 10, kind: input, shape index: {}]
  %s11 = inlined_call_operand.vmem [shape: bf16[56,64], index: 11, kind: input, shape index: {}]
  %s12 = inlined_call_operand.vmem [shape: bf16[72,64], index: 12, kind: input, shape index: {}]
  %s13 = inlined_call_operand.vmem [shape: bf16[72,32], index: 13, kind: input, shape index: {}]
  %s14 = inlined_call_operand.vmem [shape: bf16[40,16], index: 14, kind: input, shape index: {}]
  %s15 = inlined_call_operand.hbm [shape: f32[16,16], index: 15, kind: output, shape index: {}]
  %s16 = sld [smem:[#allocation0]]
  $region93: #{tpu_custom_call.1} parent=0
    _
  %s18 = ssub.s32 1, %s16
  %s19 = scalar_select 0, %s18, %s16
  $region1: #{tpu_custom_call.1} parent=0
    #allocation3 [shape = 'u8[8192]{0}', space=vmem, size = 0x2000, scoped, tag = 'output window, operand 0']
    #allocation4 [shape = 's32[2]{0}', space=sflag, size = 0x8, scoped, tag = 'scoped memory for tpu_custom_call.1']
    %20 = vsyncpa [#allocation4], 0
    %s21 = scalar_lea.sflag [#allocation4], 1
    %22 = vsyncpa %s21, 0
    loop: start=0, step=1, limit=4
    $region2: #{tpu_custom_call.1} parent=1 // loop_pre_header
      _
    $region3: #{tpu_custom_call.1} parent=1 // loop_header
      %s24 = sphi 0, %s28
      %p25 = scmp.ge.s32.totalorder %s24, 4
      %s34 = sphi 0, %s36
      %s37 = sphi 0, %s34
      %s38 = sphi 0, %s37
      %s54 = sphi 0, %s38
      %s60 = sphi 0, %s62
      %s63 = sphi 0, %s60
      %s64 = sphi 0, %s63
      %s80 = sphi 0, %s64
      %s84 = sphi 0, %s84
      %s86 = sphi 0, %s84
      %s87 = sphi 0, %s86
      %s101 = sphi 0, %s87
      %s105 = sphi 0, %s105
      %s107 = sphi 0, %s105
      %s108 = sphi 0, %s107
      %s122 = sphi 0, %s108
      %s126 = sphi 0, %s126
      %s128 = sphi 0, %s126
      %s129 = sphi 0, %s128
      %s143 = sphi 0, %s129
      %s147 = sphi 0, %s147
      %s149 = sphi 0, %s147
      %s150 = sphi 0, %s149
      %s164 = sphi 0, %s150
      %s168 = sphi 0, %s168
      %s170 = sphi 0, %s168
      %s171 = sphi 0, %s170
      %s185 = sphi 0, %s171
      %s189 = sphi 0, %s189
      %s191 = sphi 0, %s189
      %s192 = sphi 0, %s191
      %s206 = sphi 0, %s192
      %s210 = sphi 0, %s210
      %s212 = sphi 0, %s210
      %s213 = sphi 0, %s212
      %s227 = sphi 0, %s213
      %s231 = sphi 0, %s231
      %s233 = sphi 0, %s231
      %s234 = sphi 0, %s233
      %s248 = sphi 0, %s234
      %s252 = sphi 0, %s252
      %s254 = sphi 0, %s252
      %s255 = sphi 0, %s254
      %s269 = sphi 0, %s255
      %s273 = sphi 0, %s273
      %s275 = sphi 0, %s273
      %s276 = sphi 0, %s275
      %s290 = sphi 0, %s276
      %s294 = sphi 0, %s294
      %s296 = sphi 0, %s294
      %s297 = sphi 0, %s296
      %s311 = sphi 0, %s297
      %s315 = sphi 0, %s315
      %s317 = sphi 0, %s315
      %s318 = sphi 0, %s317
      %s332 = sphi 0, %s318
      %s336 = sphi 0, %s336
      %s338 = sphi 0, %s336
      %s339 = sphi 0, %s338
      %s353 = sphi 0, %s339
      %s359 = sphi 0, %s361
      %s362 = sphi 0, %s359
      %s363 = sphi 0, %s362
      %s379 = sphi 0, %s363
    $region4: #{tpu_custom_call.1} parent=1 // loop_header_branch
      %27 = sbr.rel (%p25) target = $region8
    $region5: #{tpu_custom_call.1} parent=1 // loop_body
      %s29 = ssub.s32 %s24, 1
      %s30 = ssub.s32 %s24, 2
      %s31 = sadd.s32 %s24, 1
      %s32 = ssub.s32 %s24, %s31
      %p33 = scmp.eq.s32.totalorder %s32, 0
      %s35 = sadd.s32 %s34, 1
      %s36 = scalar_select %p33, %s34, %s35
      %p39 = pneg %p33
      %p40 = scmp.eq.s32.totalorder %s24, 1
      %p41 = por %p39, %p40
      %p42 = scmp.ne.s32.totalorder %s34, %s37
      %p43 = scmp.eq.s32.totalorder %s24, 0
      %p44 = por %p42, %p43
      %p45 = scmp.ne.s32.totalorder %s34, %s37
      %p46 = scmp.eq.s32.totalorder %s29, 1
      %p47 = por %p45, %p46
      %p48 = scmp.ne.s32.totalorder %s37, %s38
      %p49 = scmp.eq.s32.totalorder %s29, 0
      %p50 = por %p48, %p49
      %p51 = scmp.ne.s32.totalorder %s37, %s38
      %p52 = scmp.eq.s32.totalorder %s30, 1
      %p53 = por %p51, %p52
      %p55 = scmp.ne.s32.totalorder %s38, %s54
      %p56 = scmp.eq.s32.totalorder %s30, 0
      %p57 = por %p55, %p56
      %s58 = ssub.s32 %s24, %s31
      %p59 = scmp.eq.s32.totalorder %s58, 0
      %s61 = sadd.s32 %s60, 1
      %s62 = scalar_select %p59, %s60, %s61
      %p65 = pneg %p59
      %p66 = scmp.eq.s32.totalorder %s24, 1
      %p67 = por %p65, %p66
      %p68 = scmp.ne.s32.totalorder %s60, %s63
      %p69 = scmp.eq.s32.totalorder %s24, 0
      %p70 = por %p68, %p69
      %p71 = scmp.ne.s32.totalorder %s60, %s63
      %p72 = scmp.eq.s32.totalorder %s29, 1
      %p73 = por %p71, %p72
      %p74 = scmp.ne.s32.totalorder %s63, %s64
      %p75 = scmp.eq.s32.totalorder %s29, 0
      %p76 = por %p74, %p75
      %p77 = scmp.ne.s32.totalorder %s63, %s64
      %p78 = scmp.eq.s32.totalorder %s30, 1
      %p79 = por %p77, %p78
      %p81 = scmp.ne.s32.totalorder %s64, %s80
      %p82 = scmp.eq.s32.totalorder %s30, 0
      %p83 = por %p81, %p82
      %s85 = sadd.s32 %s84, 1
      %p88 = scmp.eq.s32.totalorder %s24, 1
      %p89 = scmp.ne.s32.totalorder %s84, %s86
      %p90 = scmp.eq.s32.totalorder %s24, 0
      %p91 = por %p89, %p90
      %p92 = scmp.ne.s32.totalorder %s84, %s86
      %p93 = scmp.eq.s32.totalorder %s29, 1
      %p94 = por %p92, %p93
      %p95 = scmp.ne.s32.totalorder %s86, %s87
      %p96 = scmp.eq.s32.totalorder %s29, 0
      %p97 = por %p95, %p96
      %p98 = scmp.ne.s32.totalorder %s86, %s87
      %p99 = scmp.eq.s32.totalorder %s30, 1
      %p100 = por %p98, %p99
      %p102 = scmp.ne.s32.totalorder %s87, %s101
      %p103 = scmp.eq.s32.totalorder %s30, 0
      %p104 = por %p102, %p103
      %s106 = sadd.s32 %s105, 1
      %p109 = scmp.eq.s32.totalorder %s24, 1
      %p110 = scmp.ne.s32.totalorder %s105, %s107
      %p111 = scmp.eq.s32.totalorder %s24, 0
      %p112 = por %p110, %p111
      %p113 = scmp.ne.s32.totalorder %s105, %s107
      %p114 = scmp.eq.s32.totalorder %s29, 1
      %p115 = por %p113, %p114
      %p116 = scmp.ne.s32.totalorder %s107, %s108
      %p117 = scmp.eq.s32.totalorder %s29, 0
      %p118 = por %p116, %p117
      %p119 = scmp.ne.s32.totalorder %s107, %s108
      %p120 = scmp.eq.s32.totalorder %s30, 1
      %p121 = por %p119, %p120
      %p123 = scmp.ne.s32.totalorder %s108, %s122
      %p124 = scmp.eq.s32.totalorder %s30, 0
      %p125 = por %p123, %p124
      %s127 = sadd.s32 %s126, 1
      %p130 = scmp.eq.s32.totalorder %s24, 1
      %p131 = scmp.ne.s32.totalorder %s126, %s128
      %p132 = scmp.eq.s32.totalorder %s24, 0
      %p133 = por %p131, %p132
      %p134 = scmp.ne.s32.totalorder %s126, %s128
      %p135 = scmp.eq.s32.totalorder %s29, 1
      %p136 = por %p134, %p135
      %p137 = scmp.ne.s32.totalorder %s128, %s129
      %p138 = scmp.eq.s32.totalorder %s29, 0
      %p139 = por %p137, %p138
      %p140 = scmp.ne.s32.totalorder %s128, %s129
      %p141 = scmp.eq.s32.totalorder %s30, 1
      %p142 = por %p140, %p141
      %p144 = scmp.ne.s32.totalorder %s129, %s143
      %p145 = scmp.eq.s32.totalorder %s30, 0
      %p146 = por %p144, %p145
      %s148 = sadd.s32 %s147, 1
      %p151 = scmp.eq.s32.totalorder %s24, 1
      %p152 = scmp.ne.s32.totalorder %s147, %s149
      %p153 = scmp.eq.s32.totalorder %s24, 0
      %p154 = por %p152, %p153
      %p155 = scmp.ne.s32.totalorder %s147, %s149
      %p156 = scmp.eq.s32.totalorder %s29, 1
      %p157 = por %p155, %p156
      %p158 = scmp.ne.s32.totalorder %s149, %s150
      %p159 = scmp.eq.s32.totalorder %s29, 0
      %p160 = por %p158, %p159
      %p161 = scmp.ne.s32.totalorder %s149, %s150
      %p162 = scmp.eq.s32.totalorder %s30, 1
      %p163 = por %p161, %p162
      %p165 = scmp.ne.s32.totalorder %s150, %s164
      %p166 = scmp.eq.s32.totalorder %s30, 0
      %p167 = por %p165, %p166
      %s169 = sadd.s32 %s168, 1
      %p172 = scmp.eq.s32.totalorder %s24, 1
      %p173 = scmp.ne.s32.totalorder %s168, %s170
      %p174 = scmp.eq.s32.totalorder %s24, 0
      %p175 = por %p173, %p174
      %p176 = scmp.ne.s32.totalorder %s168, %s170
      %p177 = scmp.eq.s32.totalorder %s29, 1
      %p178 = por %p176, %p177
      %p179 = scmp.ne.s32.totalorder %s170, %s171
      %p180 = scmp.eq.s32.totalorder %s29, 0
      %p181 = por %p179, %p180
      %p182 = scmp.ne.s32.totalorder %s170, %s171
      %p183 = scmp.eq.s32.totalorder %s30, 1
      %p184 = por %p182, %p183
      %p186 = scmp.ne.s32.totalorder %s171, %s185
      %p187 = scmp.eq.s32.totalorder %s30, 0
      %p188 = por %p186, %p187
      %s190 = sadd.s32 %s189, 1
      %p193 = scmp.eq.s32.totalorder %s24, 1
      %p194 = scmp.ne.s32.totalorder %s189, %s191
      %p195 = scmp.eq.s32.totalorder %s24, 0
      %p196 = por %p194, %p195
      %p197 = scmp.ne.s32.totalorder %s189, %s191
      %p198 = scmp.eq.s32.totalorder %s29, 1
      %p199 = por %p197, %p198
      %p200 = scmp.ne.s32.totalorder %s191, %s192
      %p201 = scmp.eq.s32.totalorder %s29, 0
      %p202 = por %p200, %p201
      %p203 = scmp.ne.s32.totalorder %s191, %s192
      %p204 = scmp.eq.s32.totalorder %s30, 1
      %p205 = por %p203, %p204
      %p207 = scmp.ne.s32.totalorder %s192, %s206
      %p208 = scmp.eq.s32.totalorder %s30, 0
      %p209 = por %p207, %p208
      %s211 = sadd.s32 %s210, 1
      %p214 = scmp.eq.s32.totalorder %s24, 1
      %p215 = scmp.ne.s32.totalorder %s210, %s212
      %p216 = scmp.eq.s32.totalorder %s24, 0
      %p217 = por %p215, %p216
      %p218 = scmp.ne.s32.totalorder %s210, %s212
      %p219 = scmp.eq.s32.totalorder %s29, 1
      %p220 = por %p218, %p219
      %p221 = scmp.ne.s32.totalorder %s212, %s213
      %p222 = scmp.eq.s32.totalorder %s29, 0
      %p223 = por %p221, %p222
      %p224 = scmp.ne.s32.totalorder %s212, %s213
      %p225 = scmp.eq.s32.totalorder %s30, 1
      %p226 = por %p224, %p225
      %p228 = scmp.ne.s32.totalorder %s213, %s227
      %p229 = scmp.eq.s32.totalorder %s30, 0
      %p230 = por %p228, %p229
      %s232 = sadd.s32 %s231, 1
      %p235 = scmp.eq.s32.totalorder %s24, 1
      %p236 = scmp.ne.s32.totalorder %s231, %s233
      %p237 = scmp.eq.s32.totalorder %s24, 0
      %p238 = por %p236, %p237
      %p239 = scmp.ne.s32.totalorder %s231, %s233
      %p240 = scmp.eq.s32.totalorder %s29, 1
      %p241 = por %p239, %p240
      %p242 = scmp.ne.s32.totalorder %s233, %s234
      %p243 = scmp.eq.s32.totalorder %s29, 0
      %p244 = por %p242, %p243
      %p245 = scmp.ne.s32.totalorder %s233, %s234
      %p246 = scmp.eq.s32.totalorder %s30, 1
      %p247 = por %p245, %p246
      %p249 = scmp.ne.s32.totalorder %s234, %s248
      %p250 = scmp.eq.s32.totalorder %s30, 0
      %p251 = por %p249, %p250
      %s253 = sadd.s32 %s252, 1
      %p256 = scmp.eq.s32.totalorder %s24, 1
      %p257 = scmp.ne.s32.totalorder %s252, %s254
      %p258 = scmp.eq.s32.totalorder %s24, 0
      %p259 = por %p257, %p258
      %p260 = scmp.ne.s32.totalorder %s252, %s254
      %p261 = scmp.eq.s32.totalorder %s29, 1
      %p262 = por %p260, %p261
      %p263 = scmp.ne.s32.totalorder %s254, %s255
      %p264 = scmp.eq.s32.totalorder %s29, 0
      %p265 = por %p263, %p264
      %p266 = scmp.ne.s32.totalorder %s254, %s255
      %p267 = scmp.eq.s32.totalorder %s30, 1
      %p268 = por %p266, %p267
      %p270 = scmp.ne.s32.totalorder %s255, %s269
      %p271 = scmp.eq.s32.totalorder %s30, 0
      %p272 = por %p270, %p271
      %s274 = sadd.s32 %s273, 1
      %p277 = scmp.eq.s32.totalorder %s24, 1
      %p278 = scmp.ne.s32.totalorder %s273, %s275
      %p279 = scmp.eq.s32.totalorder %s24, 0
      %p280 = por %p278, %p279
      %p281 = scmp.ne.s32.totalorder %s273, %s275
      %p282 = scmp.eq.s32.totalorder %s29, 1
      %p283 = por %p281, %p282
      %p284 = scmp.ne.s32.totalorder %s275, %s276
      %p285 = scmp.eq.s32.totalorder %s29, 0
      %p286 = por %p284, %p285
      %p287 = scmp.ne.s32.totalorder %s275, %s276
      %p288 = scmp.eq.s32.totalorder %s30, 1
      %p289 = por %p287, %p288
      %p291 = scmp.ne.s32.totalorder %s276, %s290
      %p292 = scmp.eq.s32.totalorder %s30, 0
      %p293 = por %p291, %p292
      %s295 = sadd.s32 %s294, 1
      %p298 = scmp.eq.s32.totalorder %s24, 1
      %p299 = scmp.ne.s32.totalorder %s294, %s296
      %p300 = scmp.eq.s32.totalorder %s24, 0
      %p301 = por %p299, %p300
      %p302 = scmp.ne.s32.totalorder %s294, %s296
      %p303 = scmp.eq.s32.totalorder %s29, 1
      %p304 = por %p302, %p303
      %p305 = scmp.ne.s32.totalorder %s296, %s297
      %p306 = scmp.eq.s32.totalorder %s29, 0
      %p307 = por %p305, %p306
      %p308 = scmp.ne.s32.totalorder %s296, %s297
      %p309 = scmp.eq.s32.totalorder %s30, 1
      %p310 = por %p308, %p309
      %p312 = scmp.ne.s32.totalorder %s297, %s311
      %p313 = scmp.eq.s32.totalorder %s30, 0
      %p314 = por %p312, %p313
      %s316 = sadd.s32 %s315, 1
      %p319 = scmp.eq.s32.totalorder %s24, 1
      %p320 = scmp.ne.s32.totalorder %s315, %s317
      %p321 = scmp.eq.s32.totalorder %s24, 0
      %p322 = por %p320, %p321
      %p323 = scmp.ne.s32.totalorder %s315, %s317
      %p324 = scmp.eq.s32.totalorder %s29, 1
      %p325 = por %p323, %p324
      %p326 = scmp.ne.s32.totalorder %s317, %s318
      %p327 = scmp.eq.s32.totalorder %s29, 0
      %p328 = por %p326, %p327
      %p329 = scmp.ne.s32.totalorder %s317, %s318
      %p330 = scmp.eq.s32.totalorder %s30, 1
      %p331 = por %p329, %p330
      %p333 = scmp.ne.s32.totalorder %s318, %s332
      %p334 = scmp.eq.s32.totalorder %s30, 0
      %p335 = por %p333, %p334
      %s337 = sadd.s32 %s336, 1
      %p340 = scmp.eq.s32.totalorder %s24, 1
      %p341 = scmp.ne.s32.totalorder %s336, %s338
      %p342 = scmp.eq.s32.totalorder %s24, 0
      %p343 = por %p341, %p342
      %p344 = scmp.ne.s32.totalorder %s336, %s338
      %p345 = scmp.eq.s32.totalorder %s29, 1
      %p346 = por %p344, %p345
      %p347 = scmp.ne.s32.totalorder %s338, %s339
      %p348 = scmp.eq.s32.totalorder %s29, 0
      %p349 = por %p347, %p348
      %p350 = scmp.ne.s32.totalorder %s338, %s339
      %p351 = scmp.eq.s32.totalorder %s30, 1
      %p352 = por %p350, %p351
      %p354 = scmp.ne.s32.totalorder %s339, %s353
      %p355 = scmp.eq.s32.totalorder %s30, 0
      %p356 = por %p354, %p355
      %s357 = ssub.s32 %s24, %s31
      %p358 = scmp.eq.s32.totalorder %s357, 0
      %s360 = sadd.s32 %s359, 1
      %s361 = scalar_select %p358, %s359, %s360
      %p364 = pneg %p358
      %p365 = scmp.eq.s32.totalorder %s24, 1
      %p366 = por %p364, %p365
      %p367 = scmp.ne.s32.totalorder %s359, %s362
      %p368 = scmp.eq.s32.totalorder %s24, 0
      %p369 = por %p367, %p368
      %p370 = scmp.ne.s32.totalorder %s359, %s362
      %p371 = scmp.eq.s32.totalorder %s29, 1
      %p372 = por %p370, %p371
      %p373 = scmp.ne.s32.totalorder %s362, %s363
      %p374 = scmp.eq.s32.totalorder %s29, 0
      %p375 = por %p373, %p374
      %p376 = scmp.ne.s32.totalorder %s362, %s363
      %p377 = scmp.eq.s32.totalorder %s30, 1
      %p378 = por %p376, %p377
      %p380 = scmp.ne.s32.totalorder %s363, %s379
      %p381 = scmp.eq.s32.totalorder %s30, 0
      %p382 = por %p380, %p381
      %p383 = scmp.le.s32.totalorder 1, %s24
      %p384 = scmp.lt.s32.totalorder %s24, 3
      %p385 = pnand %p383, %p384
      %p386 = pneg %p385
      // Predicated region
      $region9: #{tpu_custom_call.1} parent=5 // pred_check
        _
      $region10: #{tpu_custom_call.1} parent=5 // pred_check_branch
        %388 = sbr.rel (%p385) target = $region12
      $region11: #{tpu_custom_call.1} parent=5 // pred_region
        %s389 = ssub.s32 %s24, 1
        // Predicated region
        $region13: #{tpu_custom_call.1} parent=11 // pred_check
          %p390 = pneg %p97
        $region14: #{tpu_custom_call.1} parent=11 // pred_check_branch
          %392 = sbr.rel (%p390) target = $region16
        $region15: #{tpu_custom_call.1} parent=11 // pred_region
          _
        $region16: #{tpu_custom_call.1} parent=11 // pred_fallthru
          _
        // Predicated region
        $region17: #{tpu_custom_call.1} parent=11 // pred_check
          %p393 = pneg %p118
        $region18: #{tpu_custom_call.1} parent=11 // pred_check_branch
          %395 = sbr.rel (%p393) target = $region20
        $region19: #{tpu_custom_call.1} parent=11 // pred_region
          _
        $region20: #{tpu_custom_call.1} parent=11 // pred_fallthru
          _
        // Predicated region
        $region21: #{tpu_custom_call.1} parent=11 // pred_check
          %p396 = pneg %p139
        $region22: #{tpu_custom_call.1} parent=11 // pred_check_branch
          %398 = sbr.rel (%p396) target = $region24
        $region23: #{tpu_custom_call.1} parent=11 // pred_region
          _
        $region24: #{tpu_custom_call.1} parent=11 // pred_fallthru
          _
        // Predicated region
        $region25: #{tpu_custom_call.1} parent=11 // pred_check
          %p399 = pneg %p160
        $region26: #{tpu_custom_call.1} parent=11 // pred_check_branch
          %401 = sbr.rel (%p399) target = $region28
        $region27: #{tpu_custom_call.1} parent=11 // pred_region
          _
        $region28: #{tpu_custom_call.1} parent=11 // pred_fallthru
          _
        // Predicated region
        $region29: #{tpu_custom_call.1} parent=11 // pred_check
          %p402 = pneg %p181
        $region30: #{tpu_custom_call.1} parent=11 // pred_check_branch
          %404 = sbr.rel (%p402) target = $region32
        $region31: #{tpu_custom_call.1} parent=11 // pred_region
          _
        $region32: #{tpu_custom_call.1} parent=11 // pred_fallthru
          _
        // Predicated region
        $region33: #{tpu_custom_call.1} parent=11 // pred_check
          %p405 = pneg %p202
        $region34: #{tpu_custom_call.1} parent=11 // pred_check_branch
          %407 = sbr.rel (%p405) target = $region36
        $region35: #{tpu_custom_call.1} parent=11 // pred_region
          _
        $region36: #{tpu_custom_call.1} parent=11 // pred_fallthru
          _
        // Predicated region
        $region37: #{tpu_custom_call.1} parent=11 // pred_check
          %p408 = pneg %p223
        $region38: #{tpu_custom_call.1} parent=11 // pred_check_branch
          %410 = sbr.rel (%p408) target = $region40
        $region39: #{tpu_custom_call.1} parent=11 // pred_region
          _
        $region40: #{tpu_custom_call.1} parent=11 // pred_fallthru
          _
        // Predicated region
        $region41: #{tpu_custom_call.1} parent=11 // pred_check
          %p411 = pneg %p244
        $region42: #{tpu_custom_call.1} parent=11 // pred_check_branch
          %413 = sbr.rel (%p411) target = $region44
        $region43: #{tpu_custom_call.1} parent=11 // pred_region
          _
        $region44: #{tpu_custom_call.1} parent=11 // pred_fallthru
          _
        // Predicated region
        $region45: #{tpu_custom_call.1} parent=11 // pred_check
          %p414 = pneg %p265
        $region46: #{tpu_custom_call.1} parent=11 // pred_check_branch
          %416 = sbr.rel (%p414) target = $region48
        $region47: #{tpu_custom_call.1} parent=11 // pred_region
          _
        $region48: #{tpu_custom_call.1} parent=11 // pred_fallthru
          _
        // Predicated region
        $region49: #{tpu_custom_call.1} parent=11 // pred_check
          %p417 = pneg %p286
        $region50: #{tpu_custom_call.1} parent=11 // pred_check_branch
          %419 = sbr.rel (%p417) target = $region52
        $region51: #{tpu_custom_call.1} parent=11 // pred_region
          _
        $region52: #{tpu_custom_call.1} parent=11 // pred_fallthru
          _
        // Predicated region
        $region53: #{tpu_custom_call.1} parent=11 // pred_check
          %p420 = pneg %p307
        $region54: #{tpu_custom_call.1} parent=11 // pred_check_branch
          %422 = sbr.rel (%p420) target = $region56
        $region55: #{tpu_custom_call.1} parent=11 // pred_region
          _
        $region56: #{tpu_custom_call.1} parent=11 // pred_fallthru
          _
        // Predicated region
        $region57: #{tpu_custom_call.1} parent=11 // pred_check
          %p423 = pneg %p328
        $region58: #{tpu_custom_call.1} parent=11 // pred_check_branch
          %425 = sbr.rel (%p423) target = $region60
        $region59: #{tpu_custom_call.1} parent=11 // pred_region
          _
        $region60: #{tpu_custom_call.1} parent=11 // pred_fallthru
          _
        // Predicated region
        $region61: #{tpu_custom_call.1} parent=11 // pred_check
          %p426 = pneg %p349
        $region62: #{tpu_custom_call.1} parent=11 // pred_check_branch
          %428 = sbr.rel (%p426) target = $region64
        $region63: #{tpu_custom_call.1} parent=11 // pred_region
          _
        $region64: #{tpu_custom_call.1} parent=11 // pred_fallthru
          _
      $region12: #{tpu_custom_call.1} parent=5 // pred_fallthru
        _
      %p429 = scmp.lt.s32.totalorder %s24, 2
      // Predicated region
      $region65: #{tpu_custom_call.1} parent=5 // pred_check
        %p430 = pneg %p429
      $region66: #{tpu_custom_call.1} parent=5 // pred_check_branch
        %432 = sbr.rel (%p430) target = $region68
      $region67: #{tpu_custom_call.1} parent=5 // pred_region
        // Predicated region
        $region69: #{tpu_custom_call.1} parent=67 // pred_check
          %p433 = pneg %p44
        $region70: #{tpu_custom_call.1} parent=67 // pred_check_branch
          %435 = sbr.rel (%p433) target = $region72
        $region71: #{tpu_custom_call.1} parent=67 // pred_region
          %p436 = scmp.lt.s32.totalorder %s24, 1
          %s437 = scalar_select %p436, %s24, 1
          %s438 = smul.addr %s437, 8
          %s439 = scalar_lea.vmem %s0, %s438
        $region72: #{tpu_custom_call.1} parent=67 // pred_fallthru
          _
        // Predicated region
        $region73: #{tpu_custom_call.1} parent=67 // pred_check
          %p440 = pneg %p70
        $region74: #{tpu_custom_call.1} parent=67 // pred_check_branch
          %442 = sbr.rel (%p440) target = $region76
        $region75: #{tpu_custom_call.1} parent=67 // pred_region
          %p443 = scmp.lt.s32.totalorder %s24, 1
          %s444 = scalar_select %p443, %s24, 1
          %s445 = smul.addr %s444, 8
          %s446 = scalar_lea.vmem %s1, %s445
        $region76: #{tpu_custom_call.1} parent=67 // pred_fallthru
          _
      $region68: #{tpu_custom_call.1} parent=5 // pred_fallthru
        _
      %p447 = scmp.le.s32.totalorder 1, %s24
      %p448 = scmp.lt.s32.totalorder %s24, 3
      %p449 = pnand %p447, %p448
      %p450 = pneg %p449
      // Predicated region
      $region77: #{tpu_custom_call.1} parent=5 // pred_check
        _
      $region78: #{tpu_custom_call.1} parent=5 // pred_check_branch
        %452 = sbr.rel (%p449) target = $region80
      $region79: #{tpu_custom_call.1} parent=5 // pred_region
        %s453 = ssub.s32 %s24, 1
        %p454 = scmp.lt.s32.totalorder %s29, 1
        %s455 = scalar_select %p454, %s29, 1
        %s456 = smul.addr %s455, 8
        %s457 = scalar_lea.vmem %s0, %s456
        %p458 = pneg %p50
        %p459 = pneg %p47
        %p460 = scmp.lt.s32.totalorder %s29, 1
        %s461 = scalar_select %p460, %s29, 1
        %s462 = smul.addr %s461, 8
        %s463 = scalar_lea.vmem %s1, %s462
        %p464 = pneg %p76
        %p465 = pneg %p73
        %p466 = pneg %p97
        %p467 = pneg %p94
        %p468 = pneg %p118
        %p469 = pneg %p115
        %p470 = pneg %p139
        %p471 = pneg %p136
        %p472 = pneg %p160
        %p473 = pneg %p157
        %p474 = pneg %p181
        %p475 = pneg %p178
        %p476 = pneg %p202
        %p477 = pneg %p199
        %p478 = pneg %p223
        %p479 = pneg %p220
        %p480 = pneg %p244
        %p481 = pneg %p241
        %p482 = pneg %p265
        %p483 = pneg %p262
        %p484 = pneg %p286
        %p485 = pneg %p283
        %p486 = pneg %p307
        %p487 = pneg %p304
        %p488 = pneg %p328
        %p489 = pneg %p325
        %p490 = pneg %p349
        %p491 = pneg %p346
        %p492 = pneg %p375
        %p493 = pneg %p372
        %s494 = sand.u32 %s362, 1
        %s495 = scalar_lea.sflag [#allocation4], %s494
        %s496 = sand.u32 %s362, 1
        %s497 = smul.addr %s496, 8
        %s498 = scalar_lea.vmem [#allocation3], %s497
        %p499 = scmp.lt.s32.totalorder %s29, 1
        %s500 = scalar_select %p499, %s29, 1
        %s501 = smul.addr %s500, 8
        %s502 = scalar_lea.vmem %s0, %s501
        %p503 = scmp.lt.s32.totalorder %s29, 1
        %s504 = scalar_select %p503, %s29, 1
        %s505 = smul.addr %s504, 8
        %s506 = scalar_lea.vmem %s1, %s505
        %v508 = vld [vmem:[%s502] sm:$0xff]
        %v509 = vpack.c.bf16 %v508, %v508
        %vm510 = vcmask 257024
        %511 = vst.msk [vmem:[#allocation2] sm:$0xf] %vm510, %v509
        %v512 = vld [vmem:[%s506] sm:$0xff]
        %v513 = vpack.c.bf16 %v512, %v512
        %v515 = vunpack.c.l.b16 %v513
        %v516 = vpack.c.b16 %v515, %v515
        %517 = vrot.lane.b32.xlu0 %v516, 32
        %v518 = vpop.permute.xlu0 %517
        %vm520 = vcmask 388352
        %521 = vst.msk [vmem:[#allocation2] sm:$0xf] %vm520, %v518
        %v522 = vld [vmem:[#allocation2] sm:$0xf]
        %v523 = vld [vmem:[%s2] sm:$0xf]
        %v524 = vld [vmem:[%s2 + $0x4] sm:$0xf]
        %v525 = vld [vmem:[%s2 + $0x8] sm:$0xf]
        %v526 = vld [vmem:[%s2 + $0xc] sm:$0xf]
        %v527 = vld [vmem:[%s2 + $0x10] sm:$0xf]
        %v528 = vld [vmem:[%s2 + $0x14] sm:$0xf]
        %v529 = vld [vmem:[%s2 + $0x18] sm:$0x1]
        %v530 = vunpack.c.l.bf16 %v529
        %v531 = vlaneseq
        %v532 = vshrl.u32 %v531, 7
        %v533 = vsub.s32 0, %v532
        %v534 = vrot.slane %v530, %v533
        %v541 = vunpack.c.l.b16 %v523
        %v542 = vunpack.c.l.b16 %v524
        %v543 = vunpack.c.l.b16 %v525
        %v544 = vunpack.c.l.b16 %v526
        %v545 = vunpack.c.l.b16 %v527
        %v546 = vunpack.c.l.b16 %v528
        %v547 = vpack.c.b16 %v542, %v541
        %v548 = vpack.c.b16 %v544, %v543
        %v549 = vpack.c.b16 %v546, %v545
        %vm553 = vcmask 392192
        %v555 = vsel %vm553, %v522, 0
        %557 = vmatprep.subr.bf16.mxu0 0
        %558 = vmatpush1.bf16.msra.mxu0 %v547
        %559 = vmatprep.subr.bf16.mxu0 0
        %560 = vmatpush1.bf16.msra.mxu0 %v548
        %561 = vmatprep.subr.bf16.mxu0 0
        %562 = vmatpush1.bf16.msra.mxu0 %v549
        %563 = vmatprep.subr.bf16.mxu0 0
        %564 = vmatpush1.bf16.msra.mxu0 0
        %565 = vmatprep.subr.bf16.mxu0 0
        %566 = vmatpush1.bf16.msra.mxu0 0
        %567 = vmatprep.subr.bf16.mxu0 0
        %568 = vmatpush1.bf16.msra.mxu0 0
        %569 = vmatprep.subr.bf16.mxu0 0
        %570 = vmatpush1.bf16.msra.mxu0 0
        %571 = vmatprep.subr.bf16.mxu0 0
        %572 = vmatpush1.bf16.msra.mxu0 0
        %573 = vmatprep.subr.bf16.mxu0 0
        %574 = vmatpush1.bf16.msra.mxu0 0
        %575 = vmatprep.subr.bf16.mxu0 0
        %576 = vmatpush1.bf16.msra.mxu0 0
        %577 = vmatprep.subr.bf16.mxu0 0
        %578 = vmatpush1.bf16.msra.mxu0 0
        %579 = vmatprep.subr.bf16.mxu0 0
        %580 = vmatpush1.bf16.msra.mxu0 0
        %581 = vmatprep.subr.bf16.mxu0 0
        %582 = vmatpush1.bf16.msra.mxu0 0
        %583 = vmatprep.subr.bf16.mxu0 0
        %584 = vmatpush1.bf16.msra.mxu0 0
        %585 = vmatprep.subr.bf16.mxu0 0
        %586 = vmatpush1.bf16.msra.mxu0 0
        %587 = vmatprep.subr.bf16.mxu0 0
        %588 = vmatpush1.bf16.msra.mxu0 0
        %589 = vmatprep.mubr.bf16.mxu0 0
        %590 = vmatmul.mubr.bf16.gmra.mrb[0].mxu0 %v555
        %v591 = vpop.f32.mrb[0].mxu0
        %v592 = vadd.f32 %v534, %v591
        %v593 = vpop.f32.mrb[0].mxu0
        %v594 = vpop.f32.mrb[0].mxu0
        %v595 = vpop.f32.mrb[0].mxu0
        %596 = vdwg.mxu0
        %v597 = vmax.f32 %v592, 0.0
        %v598 = vpack.c.bf16 %v597, %v597
        %v599 = vld [vmem:[%s3] sm:$0xf]
        %v600 = vld [vmem:[%s3 + $0x4] sm:$0xf]
        %v601 = vld [vmem:[%s3 + $0x8] sm:$0xf]
        %v602 = vld [vmem:[%s3 + $0xc] sm:$0xf]
        %v603 = vld [vmem:[%s3 + $0x10] sm:$0xf]
        %v604 = vld [vmem:[%s3 + $0x14] sm:$0xf]
        %v605 = vld [vmem:[%s3 + $0x18] sm:$0xf]
        %v606 = vld [vmem:[%s3 + $0x1c] sm:$0xf]
        %v607 = vld [vmem:[%s3 + $0x20] sm:$0x1]
        %v608 = vunpack.c.l.bf16 %v607
        %v609 = vlaneseq
        %v610 = vshrl.u32 %v609, 7
        %v611 = vsub.s32 0, %v610
        %v612 = vrot.slane %v608, %v611
        %v621 = vunpack.c.l.b16 %v599
        %v622 = vunpack.c.l.b16 %v600
        %v623 = vunpack.c.l.b16 %v601
        %v624 = vunpack.c.l.b16 %v602
        %v625 = vunpack.c.l.b16 %v603
        %v626 = vunpack.c.l.b16 %v604
        %v627 = vunpack.c.l.b16 %v605
        %v628 = vunpack.c.l.b16 %v606
        %v629 = vpack.c.b16 %v622, %v621
        %v630 = vpack.c.b16 %v624, %v623
        %v631 = vpack.c.b16 %v626, %v625
        %v632 = vpack.c.b16 %v628, %v627
        %vm637 = vcmask 523264
        %v639 = vsel %vm637, %v598, 0
        %641 = vmatprep.subr.bf16.mxu0 0
        %642 = vmatpush1.bf16.msra.mxu0 %v629
        %643 = vmatprep.subr.bf16.mxu0 0
        %644 = vmatpush1.bf16.msra.mxu0 %v630
        %645 = vmatprep.subr.bf16.mxu0 0
        %646 = vmatpush1.bf16.msra.mxu0 %v631
        %647 = vmatprep.subr.bf16.mxu0 0
        %648 = vmatpush1.bf16.msra.mxu0 %v632
        %649 = vmatprep.subr.bf16.mxu0 0
        %650 = vmatpush1.bf16.msra.mxu0 0
        %651 = vmatprep.subr.bf16.mxu0 0
        %652 = vmatpush1.bf16.msra.mxu0 0
        %653 = vmatprep.subr.bf16.mxu0 0
        %654 = vmatpush1.bf16.msra.mxu0 0
        %655 = vmatprep.subr.bf16.mxu0 0
        %656 = vmatpush1.bf16.msra.mxu0 0
        %657 = vmatprep.subr.bf16.mxu0 0
        %658 = vmatpush1.bf16.msra.mxu0 0
        %659 = vmatprep.subr.bf16.mxu0 0
        %660 = vmatpush1.bf16.msra.mxu0 0
        %661 = vmatprep.subr.bf16.mxu0 0
        %662 = vmatpush1.bf16.msra.mxu0 0
        %663 = vmatprep.subr.bf16.mxu0 0
        %664 = vmatpush1.bf16.msra.mxu0 0
        %665 = vmatprep.subr.bf16.mxu0 0
        %666 = vmatpush1.bf16.msra.mxu0 0
        %667 = vmatprep.subr.bf16.mxu0 0
        %668 = vmatpush1.bf16.msra.mxu0 0
        %669 = vmatprep.subr.bf16.mxu0 0
        %670 = vmatpush1.bf16.msra.mxu0 0
        %671 = vmatprep.subr.bf16.mxu0 0
        %672 = vmatpush1.bf16.msra.mxu0 0
        %673 = vmatprep.mubr.bf16.mxu0 0
        %674 = vmatmul.mubr.bf16.gmra.mrb[0].mxu0 %v639
        %v675 = vpop.f32.mrb[0].mxu0
        %v676 = vadd.f32 %v612, %v675
        %v677 = vpop.f32.mrb[0].mxu0
        %v678 = vpop.f32.mrb[0].mxu0
        %v679 = vpop.f32.mrb[0].mxu0
        %680 = vdwg.mxu0
        %v681 = vmax.f32 %v676, 0.0
        %v682 = vpack.c.bf16 %v681, %v681
        %v683 = vld [vmem:[%s4] sm:$0xf]
        %v684 = vld [vmem:[%s4 + $0x4] sm:$0xf]
        %v685 = vld [vmem:[%s4 + $0x8] sm:$0xf]
        %v686 = vld [vmem:[%s4 + $0xc] sm:$0xf]
        %v687 = vld [vmem:[%s4 + $0x10] sm:$0xf]
        %v688 = vld [vmem:[%s4 + $0x14] sm:$0xf]
        %v689 = vld [vmem:[%s4 + $0x18] sm:$0xf]
        %v690 = vld [vmem:[%s4 + $0x1c] sm:$0xf]
        %v691 = vld [vmem:[%s4 + $0x20] sm:$0x1]
        %v692 = vunpack.c.l.bf16 %v691
        %v693 = vlaneseq
        %v694 = vshrl.u32 %v693, 7
        %v695 = vsub.s32 0, %v694
        %v696 = vrot.slane %v692, %v695
        %v705 = vunpack.c.l.b16 %v683
        %v706 = vunpack.c.l.b16 %v684
        %v707 = vunpack.c.l.b16 %v685
        %v708 = vunpack.c.l.b16 %v686
        %v709 = vunpack.c.l.b16 %v687
        %v710 = vunpack.c.l.b16 %v688
        %v711 = vunpack.c.l.b16 %v689
        %v712 = vunpack.c.l.b16 %v690
        %v713 = vpack.c.b16 %v706, %v705
        %v714 = vpack.c.b16 %v708, %v707
        %v715 = vpack.c.b16 %v710, %v709
        %v716 = vpack.c.b16 %v712, %v711
        %v722 = vsel %vm637, %v682, 0
        %724 = vmatprep.subr.bf16.mxu0 0
        %725 = vmatpush1.bf16.msra.mxu0 %v713
        %726 = vmatprep.subr.bf16.mxu0 0
        %727 = vmatpush1.bf16.msra.mxu0 %v714
        %728 = vmatprep.subr.bf16.mxu0 0
        %729 = vmatpush1.bf16.msra.mxu0 %v715
        %730 = vmatprep.subr.bf16.mxu0 0
        %731 = vmatpush1.bf16.msra.mxu0 %v716
        %732 = vmatprep.subr.bf16.mxu0 0
        %733 = vmatpush1.bf16.msra.mxu0 0
        %734 = vmatprep.subr.bf16.mxu0 0
        %735 = vmatpush1.bf16.msra.mxu0 0
        %736 = vmatprep.subr.bf16.mxu0 0
        %737 = vmatpush1.bf16.msra.mxu0 0
        %738 = vmatprep.subr.bf16.mxu0 0
        %739 = vmatpush1.bf16.msra.mxu0 0
        %740 = vmatprep.subr.bf16.mxu0 0
        %741 = vmatpush1.bf16.msra.mxu0 0
        %742 = vmatprep.subr.bf16.mxu0 0
        %743 = vmatpush1.bf16.msra.mxu0 0
        %744 = vmatprep.subr.bf16.mxu0 0
        %745 = vmatpush1.bf16.msra.mxu0 0
        %746 = vmatprep.subr.bf16.mxu0 0
        %747 = vmatpush1.bf16.msra.mxu0 0
        %748 = vmatprep.subr.bf16.mxu0 0
        %749 = vmatpush1.bf16.msra.mxu0 0
        %750 = vmatprep.subr.bf16.mxu0 0
        %751 = vmatpush1.bf16.msra.mxu0 0
        %752 = vmatprep.subr.bf16.mxu0 0
        %753 = vmatpush1.bf16.msra.mxu0 0
        %754 = vmatprep.subr.bf16.mxu0 0
        %755 = vmatpush1.bf16.msra.mxu0 0
        %756 = vmatprep.mubr.bf16.mxu0 0
        %757 = vmatmul.mubr.bf16.gmra.mrb[0].mxu0 %v722
        %v758 = vpop.f32.mrb[0].mxu0
        %v759 = vadd.f32 %v696, %v758
        %v760 = vpop.f32.mrb[0].mxu0
        %v761 = vpop.f32.mrb[0].mxu0
        %v762 = vpop.f32.mrb[0].mxu0
        %763 = vdwg.mxu0
        %v764 = vmax.f32 %v759, -2.0
        %v765 = vmin.f32 %v764, 2.0
        %v766 = vsub.f32 %v512, %v759
        %v767 = vsub.f32 0.0, %v765
        %v768 = vmul.f32 %v767, 1.442695
        %v769 = vpow.pop %v768
        %771 = vrot.lane.b32.xlu0 %v769, 112
        %v772 = vpop.permute.xlu0 %771
        %v774 = vmul.f32 %v766, %v772
        %v775 = vpack.c.bf16 %v774, %v774
        %v777 = vunpack.c.l.b16 %v775
        %v778 = vpack.c.b16 %v777, %v777
        %779 = vrot.lane.b32.xlu0 %v778, 32
        %v780 = vpop.permute.xlu0 %779
        %782 = vst.msk [vmem:[#allocation2] sm:$0xf] %vm520, %v780
        %v783 = vld [vmem:[#allocation2] sm:$0xf]
        %v784 = vld [vmem:[%s5] sm:$0xf]
        %v785 = vld [vmem:[%s5 + $0x4] sm:$0xf]
        %v786 = vld [vmem:[%s5 + $0x8] sm:$0xf]
        %v787 = vld [vmem:[%s5 + $0xc] sm:$0xf]
        %v788 = vld [vmem:[%s5 + $0x10] sm:$0xf]
        %v789 = vld [vmem:[%s5 + $0x14] sm:$0xf]
        %v790 = vld [vmem:[%s5 + $0x18] sm:$0x1]
        %v791 = vunpack.c.l.bf16 %v790
        %v792 = vlaneseq
        %v793 = vshrl.u32 %v792, 7
        %v794 = vsub.s32 0, %v793
        %v795 = vrot.slane %v791, %v794
        %v802 = vunpack.c.l.b16 %v784
        %v803 = vunpack.c.l.b16 %v785
        %v804 = vunpack.c.l.b16 %v786
        %v805 = vunpack.c.l.b16 %v787
        %v806 = vunpack.c.l.b16 %v788
        %v807 = vunpack.c.l.b16 %v789
        %v808 = vpack.c.b16 %v803, %v802
        %v809 = vpack.c.b16 %v805, %v804
        %v810 = vpack.c.b16 %v807, %v806
        %v815 = vsel %vm553, %v783, 0
        %817 = vmatprep.subr.bf16.mxu0 0
        %818 = vmatpush1.bf16.msra.mxu0 %v808
        %819 = vmatprep.subr.bf16.mxu0 0
        %820 = vmatpush1.bf16.msra.mxu0 %v809
        %821 = vmatprep.subr.bf16.mxu0 0
        %822 = vmatpush1.bf16.msra.mxu0 %v810
        %823 = vmatprep.subr.bf16.mxu0 0
        %824 = vmatpush1.bf16.msra.mxu0 0
        %825 = vmatprep.subr.bf16.mxu0 0
        %826 = vmatpush1.bf16.msra.mxu0 0
        %827 = vmatprep.subr.bf16.mxu0 0
        %828 = vmatpush1.bf16.msra.mxu0 0
        %829 = vmatprep.subr.bf16.mxu0 0
        %830 = vmatpush1.bf16.msra.mxu0 0
        %831 = vmatprep.subr.bf16.mxu0 0
        %832 = vmatpush1.bf16.msra.mxu0 0
        %833 = vmatprep.subr.bf16.mxu0 0
        %834 = vmatpush1.bf16.msra.mxu0 0
        %835 = vmatprep.subr.bf16.mxu0 0
        %836 = vmatpush1.bf16.msra.mxu0 0
        %837 = vmatprep.subr.bf16.mxu0 0
        %838 = vmatpush1.bf16.msra.mxu0 0
        %839 = vmatprep.subr.bf16.mxu0 0
        %840 = vmatpush1.bf16.msra.mxu0 0
        %841 = vmatprep.subr.bf16.mxu0 0
        %842 = vmatpush1.bf16.msra.mxu0 0
        %843 = vmatprep.subr.bf16.mxu0 0
        %844 = vmatpush1.bf16.msra.mxu0 0
        %845 = vmatprep.subr.bf16.mxu0 0
        %846 = vmatpush1.bf16.msra.mxu0 0
        %847 = vmatprep.subr.bf16.mxu0 0
        %848 = vmatpush1.bf16.msra.mxu0 0
        %849 = vmatprep.mubr.bf16.mxu0 0
        %850 = vmatmul.mubr.bf16.gmra.mrb[0].mxu0 %v815
        %v851 = vpop.f32.mrb[0].mxu0
        %v852 = vadd.f32 %v795, %v851
        %v853 = vpop.f32.mrb[0].mxu0
        %v854 = vpop.f32.mrb[0].mxu0
        %v855 = vpop.f32.mrb[0].mxu0
        %856 = vdwg.mxu0
        %v857 = vmax.f32 %v852, 0.0
        %v858 = vpack.c.bf16 %v857, %v857
        %v859 = vld [vmem:[%s6] sm:$0xf]
        %v860 = vld [vmem:[%s6 + $0x4] sm:$0xf]
        %v861 = vld [vmem:[%s6 + $0x8] sm:$0xf]
        %v862 = vld [vmem:[%s6 + $0xc] sm:$0xf]
        %v863 = vld [vmem:[%s6 + $0x10] sm:$0xf]
        %v864 = vld [vmem:[%s6 + $0x14] sm:$0xf]
        %v865 = vld [vmem:[%s6 + $0x18] sm:$0xf]
        %v866 = vld [vmem:[%s6 + $0x1c] sm:$0xf]
        %v867 = vld [vmem:[%s6 + $0x20] sm:$0x1]
        %v868 = vunpack.c.l.bf16 %v867
        %v869 = vlaneseq
        %v870 = vshrl.u32 %v869, 7
        %v871 = vsub.s32 0, %v870
        %v872 = vrot.slane %v868, %v871
        %v881 = vunpack.c.l.b16 %v859
        %v882 = vunpack.c.l.b16 %v860
        %v883 = vunpack.c.l.b16 %v861
        %v884 = vunpack.c.l.b16 %v862
        %v885 = vunpack.c.l.b16 %v863
        %v886 = vunpack.c.l.b16 %v864
        %v887 = vunpack.c.l.b16 %v865
        %v888 = vunpack.c.l.b16 %v866
        %v889 = vpack.c.b16 %v882, %v881
        %v890 = vpack.c.b16 %v884, %v883
        %v891 = vpack.c.b16 %v886, %v885
        %v892 = vpack.c.b16 %v888, %v887
        %v898 = vsel %vm637, %v858, 0
        %900 = vmatprep.subr.bf16.mxu0 0
        %901 = vmatpush1.bf16.msra.mxu0 %v889
        %902 = vmatprep.subr.bf16.mxu0 0
        %903 = vmatpush1.bf16.msra.mxu0 %v890
        %904 = vmatprep.subr.bf16.mxu0 0
        %905 = vmatpush1.bf16.msra.mxu0 %v891
        %906 = vmatprep.subr.bf16.mxu0 0
        %907 = vmatpush1.bf16.msra.mxu0 %v892
        %908 = vmatprep.subr.bf16.mxu0 0
        %909 = vmatpush1.bf16.msra.mxu0 0
        %910 = vmatprep.subr.bf16.mxu0 0
        %911 = vmatpush1.bf16.msra.mxu0 0
        %912 = vmatprep.subr.bf16.mxu0 0
        %913 = vmatpush1.bf16.msra.mxu0 0
        %914 = vmatprep.subr.bf16.mxu0 0
        %915 = vmatpush1.bf16.msra.mxu0 0
        %916 = vmatprep.subr.bf16.mxu0 0
        %917 = vmatpush1.bf16.msra.mxu0 0
        %918 = vmatprep.subr.bf16.mxu0 0
        %919 = vmatpush1.bf16.msra.mxu0 0
        %920 = vmatprep.subr.bf16.mxu0 0
        %921 = vmatpush1.bf16.msra.mxu0 0
        %922 = vmatprep.subr.bf16.mxu0 0
        %923 = vmatpush1.bf16.msra.mxu0 0
        %924 = vmatprep.subr.bf16.mxu0 0
        %925 = vmatpush1.bf16.msra.mxu0 0
        %926 = vmatprep.subr.bf16.mxu0 0
        %927 = vmatpush1.bf16.msra.mxu0 0
        %928 = vmatprep.subr.bf16.mxu0 0
        %929 = vmatpush1.bf16.msra.mxu0 0
        %930 = vmatprep.subr.bf16.mxu0 0
        %931 = vmatpush1.bf16.msra.mxu0 0
        %932 = vmatprep.mubr.bf16.mxu0 0
        %933 = vmatmul.mubr.bf16.gmra.mrb[0].mxu0 %v898
        %v934 = vpop.f32.mrb[0].mxu0
        %v935 = vadd.f32 %v872, %v934
        %v936 = vpop.f32.mrb[0].mxu0
        %v937 = vpop.f32.mrb[0].mxu0
        %v938 = vpop.f32.mrb[0].mxu0
        %939 = vdwg.mxu0
        %v940 = vmax.f32 %v935, 0.0
        %v941 = vpack.c.bf16 %v940, %v940
        %v942 = vld [vmem:[%s7] sm:$0xf]
        %v943 = vld [vmem:[%s7 + $0x4] sm:$0xf]
        %v944 = vld [vmem:[%s7 + $0x8] sm:$0xf]
        %v945 = vld [vmem:[%s7 + $0xc] sm:$0xf]
        %v946 = vld [vmem:[%s7 + $0x10] sm:$0xf]
        %v947 = vld [vmem:[%s7 + $0x14] sm:$0xf]
        %v948 = vld [vmem:[%s7 + $0x18] sm:$0xf]
        %v949 = vld [vmem:[%s7 + $0x1c] sm:$0xf]
        %v950 = vld [vmem:[%s7 + $0x20] sm:$0x1]
        %v951 = vunpack.c.l.bf16 %v950
        %v952 = vlaneseq
        %v953 = vshrl.u32 %v952, 7
        %v954 = vsub.s32 0, %v953
        %v955 = vrot.slane %v951, %v954
        %v964 = vunpack.c.l.b16 %v942
        %v965 = vunpack.c.l.b16 %v943
        %v966 = vunpack.c.l.b16 %v944
        %v967 = vunpack.c.l.b16 %v945
        %v968 = vunpack.c.l.b16 %v946
        %v969 = vunpack.c.l.b16 %v947
        %v970 = vunpack.c.l.b16 %v948
        %v971 = vunpack.c.l.b16 %v949
        %v972 = vpack.c.b16 %v965, %v964
        %v973 = vpack.c.b16 %v967, %v966
        %v974 = vpack.c.b16 %v969, %v968
        %v975 = vpack.c.b16 %v971, %v970
        %v981 = vsel %vm637, %v941, 0
        %983 = vmatprep.subr.bf16.mxu0 0
        %984 = vmatpush1.bf16.msra.mxu0 %v972
        %985 = vmatprep.subr.bf16.mxu0 0
        %986 = vmatpush1.bf16.msra.mxu0 %v973
        %987 = vmatprep.subr.bf16.mxu0 0
        %988 = vmatpush1.bf16.msra.mxu0 %v974
        %989 = vmatprep.subr.bf16.mxu0 0
        %990 = vmatpush1.bf16.msra.mxu0 %v975
        %991 = vmatprep.subr.bf16.mxu0 0
        %992 = vmatpush1.bf16.msra.mxu0 0
        %993 = vmatprep.subr.bf16.mxu0 0
        %994 = vmatpush1.bf16.msra.mxu0 0
        %995 = vmatprep.subr.bf16.mxu0 0
        %996 = vmatpush1.bf16.msra.mxu0 0
        %997 = vmatprep.subr.bf16.mxu0 0
        %998 = vmatpush1.bf16.msra.mxu0 0
        %999 = vmatprep.subr.bf16.mxu0 0
        %1000 = vmatpush1.bf16.msra.mxu0 0
        %1001 = vmatprep.subr.bf16.mxu0 0
        %1002 = vmatpush1.bf16.msra.mxu0 0
        %1003 = vmatprep.subr.bf16.mxu0 0
        %1004 = vmatpush1.bf16.msra.mxu0 0
        %1005 = vmatprep.subr.bf16.mxu0 0
        %1006 = vmatpush1.bf16.msra.mxu0 0
        %1007 = vmatprep.subr.bf16.mxu0 0
        %1008 = vmatpush1.bf16.msra.mxu0 0
        %1009 = vmatprep.subr.bf16.mxu0 0
        %1010 = vmatpush1.bf16.msra.mxu0 0
        %1011 = vmatprep.subr.bf16.mxu0 0
        %1012 = vmatpush1.bf16.msra.mxu0 0
        %1013 = vmatprep.subr.bf16.mxu0 0
        %1014 = vmatpush1.bf16.msra.mxu0 0
        %1015 = vmatprep.mubr.bf16.mxu0 0
        %1016 = vmatmul.mubr.bf16.gmra.mrb[0].mxu0 %v981
        %v1017 = vpop.f32.mrb[0].mxu0
        %v1018 = vadd.f32 %v955, %v1017
        %v1019 = vpop.f32.mrb[0].mxu0
        %v1020 = vpop.f32.mrb[0].mxu0
        %v1021 = vpop.f32.mrb[0].mxu0
        %1022 = vdwg.mxu0
        %v1023 = vmax.f32 %v1018, -2.0
        %v1024 = vmin.f32 %v1023, 2.0
        %v1025 = vsub.f32 %v774, %v1018
        %v1026 = vsub.f32 0.0, %v1024
        %v1027 = vmul.f32 %v1026, 1.442695
        %v1028 = vpow.pop %v1027
        %1030 = vrot.lane.b32.xlu0 %v1028, 112
        %v1031 = vpop.permute.xlu0 %1030
        %v1033 = vmul.f32 %v1025, %v1031
        %v1034 = vpack.c.bf16 %v1033, %v1033
        %v1036 = vunpack.c.l.b16 %v1034
        %v1037 = vpack.c.b16 %v1036, %v1036
        %1038 = vrot.lane.b32.xlu0 %v1037, 32
        %v1039 = vpop.permute.xlu0 %1038
        %1041 = vst.msk [vmem:[#allocation2] sm:$0xf] %vm520, %v1039
        %v1042 = vld [vmem:[#allocation2] sm:$0xf]
        %v1043 = vld [vmem:[%s8] sm:$0xf]
        %v1044 = vld [vmem:[%s8 + $0x4] sm:$0xf]
        %v1045 = vld [vmem:[%s8 + $0x8] sm:$0xf]
        %v1046 = vld [vmem:[%s8 + $0xc] sm:$0xf]
        %v1047 = vld [vmem:[%s8 + $0x10] sm:$0xf]
        %v1048 = vld [vmem:[%s8 + $0x14] sm:$0xf]
        %v1049 = vld [vmem:[%s8 + $0x18] sm:$0x1]
        %v1050 = vunpack.c.l.bf16 %v1049
        %v1051 = vlaneseq
        %v1052 = vshrl.u32 %v1051, 7
        %v1053 = vsub.s32 0, %v1052
        %v1054 = vrot.slane %v1050, %v1053
        %v1061 = vunpack.c.l.b16 %v1043
        %v1062 = vunpack.c.l.b16 %v1044
        %v1063 = vunpack.c.l.b16 %v1045
        %v1064 = vunpack.c.l.b16 %v1046
        %v1065 = vunpack.c.l.b16 %v1047
        %v1066 = vunpack.c.l.b16 %v1048
        %v1067 = vpack.c.b16 %v1062, %v1061
        %v1068 = vpack.c.b16 %v1064, %v1063
        %v1069 = vpack.c.b16 %v1066, %v1065
        %v1074 = vsel %vm553, %v1042, 0
        %1076 = vmatprep.subr.bf16.mxu0 0
        %1077 = vmatpush1.bf16.msra.mxu0 %v1067
        %1078 = vmatprep.subr.bf16.mxu0 0
        %1079 = vmatpush1.bf16.msra.mxu0 %v1068
        %1080 = vmatprep.subr.bf16.mxu0 0
        %1081 = vmatpush1.bf16.msra.mxu0 %v1069
        %1082 = vmatprep.subr.bf16.mxu0 0
        %1083 = vmatpush1.bf16.msra.mxu0 0
        %1084 = vmatprep.subr.bf16.mxu0 0
        %1085 = vmatpush1.bf16.msra.mxu0 0
        %1086 = vmatprep.subr.bf16.mxu0 0
        %1087 = vmatpush1.bf16.msra.mxu0 0
        %1088 = vmatprep.subr.bf16.mxu0 0
        %1089 = vmatpush1.bf16.msra.mxu0 0
        %1090 = vmatprep.subr.bf16.mxu0 0
        %1091 = vmatpush1.bf16.msra.mxu0 0
        %1092 = vmatprep.subr.bf16.mxu0 0
        %1093 = vmatpush1.bf16.msra.mxu0 0
        %1094 = vmatprep.subr.bf16.mxu0 0
        %1095 = vmatpush1.bf16.msra.mxu0 0
        %1096 = vmatprep.subr.bf16.mxu0 0
        %1097 = vmatpush1.bf16.msra.mxu0 0
        %1098 = vmatprep.subr.bf16.mxu0 0
        %1099 = vmatpush1.bf16.msra.mxu0 0
        %1100 = vmatprep.subr.bf16.mxu0 0
        %1101 = vmatpush1.bf16.msra.mxu0 0
        %1102 = vmatprep.subr.bf16.mxu0 0
        %1103 = vmatpush1.bf16.msra.mxu0 0
        %1104 = vmatprep.subr.bf16.mxu0 0
        %1105 = vmatpush1.bf16.msra.mxu0 0
        %1106 = vmatprep.subr.bf16.mxu0 0
        %1107 = vmatpush1.bf16.msra.mxu0 0
        %1108 = vmatprep.mubr.bf16.mxu0 0
        %1109 = vmatmul.mubr.bf16.gmra.mrb[0].mxu0 %v1074
        %v1110 = vpop.f32.mrb[0].mxu0
        %v1111 = vadd.f32 %v1054, %v1110
        %v1112 = vpop.f32.mrb[0].mxu0
        %v1113 = vpop.f32.mrb[0].mxu0
        %v1114 = vpop.f32.mrb[0].mxu0
        %1115 = vdwg.mxu0
        %v1116 = vmax.f32 %v1111, 0.0
        %v1117 = vpack.c.bf16 %v1116, %v1116
        %v1118 = vld [vmem:[%s9] sm:$0xf]
        %v1119 = vld [vmem:[%s9 + $0x4] sm:$0xf]
        %v1120 = vld [vmem:[%s9 + $0x8] sm:$0xf]
        %v1121 = vld [vmem:[%s9 + $0xc] sm:$0xf]
        %v1122 = vld [vmem:[%s9 + $0x10] sm:$0xf]
        %v1123 = vld [vmem:[%s9 + $0x14] sm:$0xf]
        %v1124 = vld [vmem:[%s9 + $0x18] sm:$0xf]
        %v1125 = vld [vmem:[%s9 + $0x1c] sm:$0xf]
        %v1126 = vld [vmem:[%s9 + $0x20] sm:$0x1]
        %v1127 = vunpack.c.l.bf16 %v1126
        %v1128 = vlaneseq
        %v1129 = vshrl.u32 %v1128, 7
        %v1130 = vsub.s32 0, %v1129
        %v1131 = vrot.slane %v1127, %v1130
        %v1140 = vunpack.c.l.b16 %v1118
        %v1141 = vunpack.c.l.b16 %v1119
        %v1142 = vunpack.c.l.b16 %v1120
        %v1143 = vunpack.c.l.b16 %v1121
        %v1144 = vunpack.c.l.b16 %v1122
        %v1145 = vunpack.c.l.b16 %v1123
        %v1146 = vunpack.c.l.b16 %v1124
        %v1147 = vunpack.c.l.b16 %v1125
        %v1148 = vpack.c.b16 %v1141, %v1140
        %v1149 = vpack.c.b16 %v1143, %v1142
        %v1150 = vpack.c.b16 %v1145, %v1144
        %v1151 = vpack.c.b16 %v1147, %v1146
        %v1157 = vsel %vm637, %v1117, 0
        %1159 = vmatprep.subr.bf16.mxu0 0
        %1160 = vmatpush1.bf16.msra.mxu0 %v1148
        %1161 = vmatprep.subr.bf16.mxu0 0
        %1162 = vmatpush1.bf16.msra.mxu0 %v1149
        %1163 = vmatprep.subr.bf16.mxu0 0
        %1164 = vmatpush1.bf16.msra.mxu0 %v1150
        %1165 = vmatprep.subr.bf16.mxu0 0
        %1166 = vmatpush1.bf16.msra.mxu0 %v1151
        %1167 = vmatprep.subr.bf16.mxu0 0
        %1168 = vmatpush1.bf16.msra.mxu0 0
        %1169 = vmatprep.subr.bf16.mxu0 0
        %1170 = vmatpush1.bf16.msra.mxu0 0
        %1171 = vmatprep.subr.bf16.mxu0 0
        %1172 = vmatpush1.bf16.msra.mxu0 0
        %1173 = vmatprep.subr.bf16.mxu0 0
        %1174 = vmatpush1.bf16.msra.mxu0 0
        %1175 = vmatprep.subr.bf16.mxu0 0
        %1176 = vmatpush1.bf16.msra.mxu0 0
        %1177 = vmatprep.subr.bf16.mxu0 0
        %1178 = vmatpush1.bf16.msra.mxu0 0
        %1179 = vmatprep.subr.bf16.mxu0 0
        %1180 = vmatpush1.bf16.msra.mxu0 0
        %1181 = vmatprep.subr.bf16.mxu0 0
        %1182 = vmatpush1.bf16.msra.mxu0 0
        %1183 = vmatprep.subr.bf16.mxu0 0
        %1184 = vmatpush1.bf16.msra.mxu0 0
        %1185 = vmatprep.subr.bf16.mxu0 0
        %1186 = vmatpush1.bf16.msra.mxu0 0
        %1187 = vmatprep.subr.bf16.mxu0 0
        %1188 = vmatpush1.bf16.msra.mxu0 0
        %1189 = vmatprep.subr.bf16.mxu0 0
        %1190 = vmatpush1.bf16.msra.mxu0 0
        %1191 = vmatprep.mubr.bf16.mxu0 0
        %1192 = vmatmul.mubr.bf16.gmra.mrb[0].mxu0 %v1157
        %v1193 = vpop.f32.mrb[0].mxu0
        %v1194 = vadd.f32 %v1131, %v1193
        %v1195 = vpop.f32.mrb[0].mxu0
        %v1196 = vpop.f32.mrb[0].mxu0
        %v1197 = vpop.f32.mrb[0].mxu0
        %1198 = vdwg.mxu0
        %v1199 = vmax.f32 %v1194, 0.0
        %v1200 = vpack.c.bf16 %v1199, %v1199
        %v1201 = vld [vmem:[%s10] sm:$0xf]
        %v1202 = vld [vmem:[%s10 + $0x4] sm:$0xf]
        %v1203 = vld [vmem:[%s10 + $0x8] sm:$0xf]
        %v1204 = vld [vmem:[%s10 + $0xc] sm:$0xf]
        %v1205 = vld [vmem:[%s10 + $0x10] sm:$0xf]
        %v1206 = vld [vmem:[%s10 + $0x14] sm:$0xf]
        %v1207 = vld [vmem:[%s10 + $0x18] sm:$0xf]
        %v1208 = vld [vmem:[%s10 + $0x1c] sm:$0xf]
        %v1209 = vld [vmem:[%s10 + $0x20] sm:$0x1]
        %v1210 = vunpack.c.l.bf16 %v1209
        %v1211 = vlaneseq
        %v1212 = vshrl.u32 %v1211, 7
        %v1213 = vsub.s32 0, %v1212
        %v1214 = vrot.slane %v1210, %v1213
        %v1223 = vunpack.c.l.b16 %v1201
        %v1224 = vunpack.c.l.b16 %v1202
        %v1225 = vunpack.c.l.b16 %v1203
        %v1226 = vunpack.c.l.b16 %v1204
        %v1227 = vunpack.c.l.b16 %v1205
        %v1228 = vunpack.c.l.b16 %v1206
        %v1229 = vunpack.c.l.b16 %v1207
        %v1230 = vunpack.c.l.b16 %v1208
        %v1231 = vpack.c.b16 %v1224, %v1223
        %v1232 = vpack.c.b16 %v1226, %v1225
        %v1233 = vpack.c.b16 %v1228, %v1227
        %v1234 = vpack.c.b16 %v1230, %v1229
        %v1240 = vsel %vm637, %v1200, 0
        %1242 = vmatprep.subr.bf16.mxu0 0
        %1243 = vmatpush1.bf16.msra.mxu0 %v1231
        %1244 = vmatprep.subr.bf16.mxu0 0
        %1245 = vmatpush1.bf16.msra.mxu0 %v1232
        %1246 = vmatprep.subr.bf16.mxu0 0
        %1247 = vmatpush1.bf16.msra.mxu0 %v1233
        %1248 = vmatprep.subr.bf16.mxu0 0
        %1249 = vmatpush1.bf16.msra.mxu0 %v1234
        %1250 = vmatprep.subr.bf16.mxu0 0
        %1251 = vmatpush1.bf16.msra.mxu0 0
        %1252 = vmatprep.subr.bf16.mxu0 0
        %1253 = vmatpush1.bf16.msra.mxu0 0
        %1254 = vmatprep.subr.bf16.mxu0 0
        %1255 = vmatpush1.bf16.msra.mxu0 0
        %1256 = vmatprep.subr.bf16.mxu0 0
        %1257 = vmatpush1.bf16.msra.mxu0 0
        %1258 = vmatprep.subr.bf16.mxu0 0
        %1259 = vmatpush1.bf16.msra.mxu0 0
        %1260 = vmatprep.subr.bf16.mxu0 0
        %1261 = vmatpush1.bf16.msra.mxu0 0
        %1262 = vmatprep.subr.bf16.mxu0 0
        %1263 = vmatpush1.bf16.msra.mxu0 0
        %1264 = vmatprep.subr.bf16.mxu0 0
        %1265 = vmatpush1.bf16.msra.mxu0 0
        %1266 = vmatprep.subr.bf16.mxu0 0
        %1267 = vmatpush1.bf16.msra.mxu0 0
        %1268 = vmatprep.subr.bf16.mxu0 0
        %1269 = vmatpush1.bf16.msra.mxu0 0
        %1270 = vmatprep.subr.bf16.mxu0 0
        %1271 = vmatpush1.bf16.msra.mxu0 0
        %1272 = vmatprep.subr.bf16.mxu0 0
        %1273 = vmatpush1.bf16.msra.mxu0 0
        %1274 = vmatprep.mubr.bf16.mxu0 0
        %1275 = vmatmul.mubr.bf16.gmra.mrb[0].mxu0 %v1240
        %v1276 = vpop.f32.mrb[0].mxu0
        %v1277 = vadd.f32 %v1214, %v1276
        %v1278 = vpop.f32.mrb[0].mxu0
        %v1279 = vpop.f32.mrb[0].mxu0
        %v1280 = vpop.f32.mrb[0].mxu0
        %1281 = vdwg.mxu0
        %v1282 = vmax.f32 %v1277, -2.0
        %v1283 = vmin.f32 %v1282, 2.0
        %v1284 = vsub.f32 %v1033, %v1277
        %v1285 = vsub.f32 0.0, %v1283
        %v1286 = vmul.f32 %v1285, 1.442695
        %v1287 = vpow.pop %v1286
        %1289 = vrot.lane.b32.xlu0 %v1287, 112
        %v1290 = vpop.permute.xlu0 %1289
        %v1292 = vmul.f32 %v1284, %v1290
        %v1293 = vpack.c.bf16 %v1292, %v1292
        %v1295 = vunpack.c.l.b16 %v1293
        %v1296 = vpack.c.b16 %v1295, %v1295
        %1297 = vrot.lane.b32.xlu0 %v1296, 32
        %v1298 = vpop.permute.xlu0 %1297
        %1300 = vst.msk [vmem:[#allocation2] sm:$0xf] %vm520, %v1298
        %v1301 = vld [vmem:[#allocation2] sm:$0xf]
        %v1302 = vld [vmem:[%s11] sm:$0xf]
        %v1303 = vld [vmem:[%s11 + $0x4] sm:$0xf]
        %v1304 = vld [vmem:[%s11 + $0x8] sm:$0xf]
        %v1305 = vld [vmem:[%s11 + $0xc] sm:$0xf]
        %v1306 = vld [vmem:[%s11 + $0x10] sm:$0xf]
        %v1307 = vld [vmem:[%s11 + $0x14] sm:$0xf]
        %v1308 = vld [vmem:[%s11 + $0x18] sm:$0x1]
        %v1309 = vunpack.c.l.bf16 %v1308
        %v1310 = vlaneseq
        %v1311 = vshrl.u32 %v1310, 7
        %v1312 = vsub.s32 0, %v1311
        %v1313 = vrot.slane %v1309, %v1312
        %v1320 = vunpack.c.l.b16 %v1302
        %v1321 = vunpack.c.l.b16 %v1303
        %v1322 = vunpack.c.l.b16 %v1304
        %v1323 = vunpack.c.l.b16 %v1305
        %v1324 = vunpack.c.l.b16 %v1306
        %v1325 = vunpack.c.l.b16 %v1307
        %v1326 = vpack.c.b16 %v1321, %v1320
        %v1327 = vpack.c.b16 %v1323, %v1322
        %v1328 = vpack.c.b16 %v1325, %v1324
        %v1333 = vsel %vm553, %v1301, 0
        %1335 = vmatprep.subr.bf16.mxu0 0
        %1336 = vmatpush1.bf16.msra.mxu0 %v1326
        %1337 = vmatprep.subr.bf16.mxu0 0
        %1338 = vmatpush1.bf16.msra.mxu0 %v1327
        %1339 = vmatprep.subr.bf16.mxu0 0
        %1340 = vmatpush1.bf16.msra.mxu0 %v1328
        %1341 = vmatprep.subr.bf16.mxu0 0
        %1342 = vmatpush1.bf16.msra.mxu0 0
        %1343 = vmatprep.subr.bf16.mxu0 0
        %1344 = vmatpush1.bf16.msra.mxu0 0
        %1345 = vmatprep.subr.bf16.mxu0 0
        %1346 = vmatpush1.bf16.msra.mxu0 0
        %1347 = vmatprep.subr.bf16.mxu0 0
        %1348 = vmatpush1.bf16.msra.mxu0 0
        %1349 = vmatprep.subr.bf16.mxu0 0
        %1350 = vmatpush1.bf16.msra.mxu0 0
        %1351 = vmatprep.subr.bf16.mxu0 0
        %1352 = vmatpush1.bf16.msra.mxu0 0
        %1353 = vmatprep.subr.bf16.mxu0 0
        %1354 = vmatpush1.bf16.msra.mxu0 0
        %1355 = vmatprep.subr.bf16.mxu0 0
        %1356 = vmatpush1.bf16.msra.mxu0 0
        %1357 = vmatprep.subr.bf16.mxu0 0
        %1358 = vmatpush1.bf16.msra.mxu0 0
        %1359 = vmatprep.subr.bf16.mxu0 0
        %1360 = vmatpush1.bf16.msra.mxu0 0
        %1361 = vmatprep.subr.bf16.mxu0 0
        %1362 = vmatpush1.bf16.msra.mxu0 0
        %1363 = vmatprep.subr.bf16.mxu0 0
        %1364 = vmatpush1.bf16.msra.mxu0 0
        %1365 = vmatprep.subr.bf16.mxu0 0
        %1366 = vmatpush1.bf16.msra.mxu0 0
        %1367 = vmatprep.mubr.bf16.mxu0 0
        %1368 = vmatmul.mubr.bf16.gmra.mrb[0].mxu0 %v1333
        %v1369 = vpop.f32.mrb[0].mxu0
        %v1370 = vadd.f32 %v1313, %v1369
        %v1371 = vpop.f32.mrb[0].mxu0
        %v1372 = vpop.f32.mrb[0].mxu0
        %v1373 = vpop.f32.mrb[0].mxu0
        %1374 = vdwg.mxu0
        %v1375 = vmax.f32 %v1370, 0.0
        %v1376 = vpack.c.bf16 %v1375, %v1375
        %v1377 = vld [vmem:[%s12] sm:$0xf]
        %v1378 = vld [vmem:[%s12 + $0x4] sm:$0xf]
        %v1379 = vld [vmem:[%s12 + $0x8] sm:$0xf]
        %v1380 = vld [vmem:[%s12 + $0xc] sm:$0xf]
        %v1381 = vld [vmem:[%s12 + $0x10] sm:$0xf]
        %v1382 = vld [vmem:[%s12 + $0x14] sm:$0xf]
        %v1383 = vld [vmem:[%s12 + $0x18] sm:$0xf]
        %v1384 = vld [vmem:[%s12 + $0x1c] sm:$0xf]
        %v1385 = vld [vmem:[%s12 + $0x20] sm:$0x1]
        %v1386 = vunpack.c.l.bf16 %v1385
        %v1387 = vlaneseq
        %v1388 = vshrl.u32 %v1387, 7
        %v1389 = vsub.s32 0, %v1388
        %v1390 = vrot.slane %v1386, %v1389
        %v1399 = vunpack.c.l.b16 %v1377
        %v1400 = vunpack.c.l.b16 %v1378
        %v1401 = vunpack.c.l.b16 %v1379
        %v1402 = vunpack.c.l.b16 %v1380
        %v1403 = vunpack.c.l.b16 %v1381
        %v1404 = vunpack.c.l.b16 %v1382
        %v1405 = vunpack.c.l.b16 %v1383
        %v1406 = vunpack.c.l.b16 %v1384
        %v1407 = vpack.c.b16 %v1400, %v1399
        %v1408 = vpack.c.b16 %v1402, %v1401
        %v1409 = vpack.c.b16 %v1404, %v1403
        %v1410 = vpack.c.b16 %v1406, %v1405
        %v1416 = vsel %vm637, %v1376, 0
        %1418 = vmatprep.subr.bf16.mxu0 0
        %1419 = vmatpush1.bf16.msra.mxu0 %v1407
        %1420 = vmatprep.subr.bf16.mxu0 0
        %1421 = vmatpush1.bf16.msra.mxu0 %v1408
        %1422 = vmatprep.subr.bf16.mxu0 0
        %1423 = vmatpush1.bf16.msra.mxu0 %v1409
        %1424 = vmatprep.subr.bf16.mxu0 0
        %1425 = vmatpush1.bf16.msra.mxu0 %v1410
        %1426 = vmatprep.subr.bf16.mxu0 0
        %1427 = vmatpush1.bf16.msra.mxu0 0
        %1428 = vmatprep.subr.bf16.mxu0 0
        %1429 = vmatpush1.bf16.msra.mxu0 0
        %1430 = vmatprep.subr.bf16.mxu0 0
        %1431 = vmatpush1.bf16.msra.mxu0 0
        %1432 = vmatprep.subr.bf16.mxu0 0
        %1433 = vmatpush1.bf16.msra.mxu0 0
        %1434 = vmatprep.subr.bf16.mxu0 0
        %1435 = vmatpush1.bf16.msra.mxu0 0
        %1436 = vmatprep.subr.bf16.mxu0 0
        %1437 = vmatpush1.bf16.msra.mxu0 0
        %1438 = vmatprep.subr.bf16.mxu0 0
        %1439 = vmatpush1.bf16.msra.mxu0 0
        %1440 = vmatprep.subr.bf16.mxu0 0
        %1441 = vmatpush1.bf16.msra.mxu0 0
        %1442 = vmatprep.subr.bf16.mxu0 0
        %1443 = vmatpush1.bf16.msra.mxu0 0
        %1444 = vmatprep.subr.bf16.mxu0 0
        %1445 = vmatpush1.bf16.msra.mxu0 0
        %1446 = vmatprep.subr.bf16.mxu0 0
        %1447 = vmatpush1.bf16.msra.mxu0 0
        %1448 = vmatprep.subr.bf16.mxu0 0
        %1449 = vmatpush1.bf16.msra.mxu0 0
        %1450 = vmatprep.mubr.bf16.mxu0 0
        %1451 = vmatmul.mubr.bf16.gmra.mrb[0].mxu0 %v1416
        %v1452 = vpop.f32.mrb[0].mxu0
        %v1453 = vadd.f32 %v1390, %v1452
        %v1454 = vpop.f32.mrb[0].mxu0
        %v1455 = vpop.f32.mrb[0].mxu0
        %v1456 = vpop.f32.mrb[0].mxu0
        %1457 = vdwg.mxu0
        %v1458 = vmax.f32 %v1453, 0.0
        %v1459 = vpack.c.bf16 %v1458, %v1458
        %v1460 = vld [vmem:[%s13] sm:$0xf]
        %v1461 = vld [vmem:[%s13 + $0x4] sm:$0xf]
        %v1462 = vld [vmem:[%s13 + $0x8] sm:$0xf]
        %v1463 = vld [vmem:[%s13 + $0xc] sm:$0xf]
        %v1464 = vld [vmem:[%s13 + $0x10] sm:$0xf]
        %v1465 = vld [vmem:[%s13 + $0x14] sm:$0xf]
        %v1466 = vld [vmem:[%s13 + $0x18] sm:$0xf]
        %v1467 = vld [vmem:[%s13 + $0x1c] sm:$0xf]
        %v1468 = vld [vmem:[%s13 + $0x20] sm:$0x1]
        %v1469 = vunpack.c.l.bf16 %v1468
        %v1470 = vlaneseq
        %v1471 = vshrl.u32 %v1470, 7
        %v1472 = vsub.s32 0, %v1471
        %v1473 = vrot.slane %v1469, %v1472
        %v1482 = vunpack.c.l.b16 %v1460
        %v1483 = vunpack.c.l.b16 %v1461
        %v1484 = vunpack.c.l.b16 %v1462
        %v1485 = vunpack.c.l.b16 %v1463
        %v1486 = vunpack.c.l.b16 %v1464
        %v1487 = vunpack.c.l.b16 %v1465
        %v1488 = vunpack.c.l.b16 %v1466
        %v1489 = vunpack.c.l.b16 %v1467
        %v1490 = vpack.c.b16 %v1483, %v1482
        %v1491 = vpack.c.b16 %v1485, %v1484
        %v1492 = vpack.c.b16 %v1487, %v1486
        %v1493 = vpack.c.b16 %v1489, %v1488
        %v1499 = vsel %vm637, %v1459, 0
        %1501 = vmatprep.subr.bf16.mxu0 0
        %1502 = vmatpush1.bf16.msra.mxu0 %v1490
        %1503 = vmatprep.subr.bf16.mxu0 0
        %1504 = vmatpush1.bf16.msra.mxu0 %v1491
        %1505 = vmatprep.subr.bf16.mxu0 0
        %1506 = vmatpush1.bf16.msra.mxu0 %v1492
        %1507 = vmatprep.subr.bf16.mxu0 0
        %1508 = vmatpush1.bf16.msra.mxu0 %v1493
        %1509 = vmatprep.subr.bf16.mxu0 0
        %1510 = vmatpush1.bf16.msra.mxu0 0
        %1511 = vmatprep.subr.bf16.mxu0 0
        %1512 = vmatpush1.bf16.msra.mxu0 0
        %1513 = vmatprep.subr.bf16.mxu0 0
        %1514 = vmatpush1.bf16.msra.mxu0 0
        %1515 = vmatprep.subr.bf16.mxu0 0
        %1516 = vmatpush1.bf16.msra.mxu0 0
        %1517 = vmatprep.subr.bf16.mxu0 0
        %1518 = vmatpush1.bf16.msra.mxu0 0
        %1519 = vmatprep.subr.bf16.mxu0 0
        %1520 = vmatpush1.bf16.msra.mxu0 0
        %1521 = vmatprep.subr.bf16.mxu0 0
        %1522 = vmatpush1.bf16.msra.mxu0 0
        %1523 = vmatprep.subr.bf16.mxu0 0
        %1524 = vmatpush1.bf16.msra.mxu0 0
        %1525 = vmatprep.subr.bf16.mxu0 0
        %1526 = vmatpush1.bf16.msra.mxu0 0
        %1527 = vmatprep.subr.bf16.mxu0 0
        %1528 = vmatpush1.bf16.msra.mxu0 0
        %1529 = vmatprep.subr.bf16.mxu0 0
        %1530 = vmatpush1.bf16.msra.mxu0 0
        %1531 = vmatprep.subr.bf16.mxu0 0
        %1532 = vmatpush1.bf16.msra.mxu0 0
        %1533 = vmatprep.mubr.bf16.mxu0 0
        %1534 = vmatmul.mubr.bf16.gmra.mrb[0].mxu0 %v1499
        %v1535 = vpop.f32.mrb[0].mxu0
        %v1536 = vadd.f32 %v1473, %v1535
        %v1537 = vpop.f32.mrb[0].mxu0
        %v1538 = vpop.f32.mrb[0].mxu0
        %v1539 = vpop.f32.mrb[0].mxu0
        %1540 = vdwg.mxu0
        %v1541 = vmax.f32 %v1536, -2.0
        %v1542 = vmin.f32 %v1541, 2.0
        %v1543 = vsub.f32 %v1292, %v1536
        %v1544 = vsub.f32 0.0, %v1542
        %v1545 = vmul.f32 %v1544, 1.442695
        %v1546 = vpow.pop %v1545
        %1548 = vrot.lane.b32.xlu0 %v1546, 112
        %v1549 = vpop.permute.xlu0 %1548
        %v1551 = vmul.f32 %v1543, %v1549
        %v1552 = vpack.c.bf16 %v1551, %v1551
        %v1553 = vld [vmem:[%s14] sm:$0xf]
        %v1554 = vld [vmem:[%s14 + $0x4] sm:$0xf]
        %v1555 = vld [vmem:[%s14 + $0x8] sm:$0xf]
        %v1556 = vld [vmem:[%s14 + $0xc] sm:$0xf]
        %v1559 = vunpack.c.l.b16 %v1555
        %v1560 = vunpack.c.l.b16 %v1556
        %v1561 = vpack.c.b16 %v1560, %v1559
        %vm1563 = vcmask 130048
        %v1565 = vsel %vm1563, %v1034, 0
        %1567 = vmatprep.subr.bf16.mxu0 0
        %1568 = vmatpush1.bf16.msra.mxu0 %v1561
        %1569 = vmatprep.subr.bf16.mxu0 0
        %1570 = vmatpush1.bf16.msra.mxu0 0
        %1571 = vmatprep.subr.bf16.mxu0 0
        %1572 = vmatpush1.bf16.msra.mxu0 0
        %1573 = vmatprep.subr.bf16.mxu0 0
        %1574 = vmatpush1.bf16.msra.mxu0 0
        %1575 = vmatprep.subr.bf16.mxu0 0
        %1576 = vmatpush1.bf16.msra.mxu0 0
        %1577 = vmatprep.subr.bf16.mxu0 0
        %1578 = vmatpush1.bf16.msra.mxu0 0
        %1579 = vmatprep.subr.bf16.mxu0 0
        %1580 = vmatpush1.bf16.msra.mxu0 0
        %1581 = vmatprep.subr.bf16.mxu0 0
        %1582 = vmatpush1.bf16.msra.mxu0 0
        %1583 = vmatprep.subr.bf16.mxu0 0
        %1584 = vmatpush1.bf16.msra.mxu0 0
        %1585 = vmatprep.subr.bf16.mxu0 0
        %1586 = vmatpush1.bf16.msra.mxu0 0
        %1587 = vmatprep.subr.bf16.mxu0 0
        %1588 = vmatpush1.bf16.msra.mxu0 0
        %1589 = vmatprep.subr.bf16.mxu0 0
        %1590 = vmatpush1.bf16.msra.mxu0 0
        %1591 = vmatprep.subr.bf16.mxu0 0
        %1592 = vmatpush1.bf16.msra.mxu0 0
        %1593 = vmatprep.subr.bf16.mxu0 0
        %1594 = vmatpush1.bf16.msra.mxu0 0
        %1595 = vmatprep.subr.bf16.mxu0 0
        %1596 = vmatpush1.bf16.msra.mxu0 0
        %1597 = vmatprep.subr.bf16.mxu0 0
        %1598 = vmatpush1.bf16.msra.mxu0 0
        %1599 = vmatprep.mubr.bf16.mxu0 0
        %1600 = vmatmul.mubr.bf16.gmra.mrb[0].mxu0 %v1565
        %v1601 = vpop.f32.mrb[0].mxu0
        %v1602 = vadd.f32 0.0, %v1601
        %v1603 = vpop.f32.mrb[0].mxu0
        %v1604 = vpop.f32.mrb[0].mxu0
        %v1605 = vpop.f32.mrb[0].mxu0
        %1606 = vdwg.mxu0
        %v1609 = vunpack.c.l.b16 %v1553
        %v1610 = vunpack.c.l.b16 %v1554
        %v1611 = vpack.c.b16 %v1610, %v1609
        %v1614 = vsel %vm1563, %v1552, 0
        %1616 = vmatprep.subr.bf16.mxu0 0
        %1617 = vmatpush1.bf16.msra.mxu0 %v1611
        %1618 = vmatprep.subr.bf16.mxu0 0
        %1619 = vmatpush1.bf16.msra.mxu0 0
        %1620 = vmatprep.subr.bf16.mxu0 0
        %1621 = vmatpush1.bf16.msra.mxu0 0
        %1622 = vmatprep.subr.bf16.mxu0 0
        %1623 = vmatpush1.bf16.msra.mxu0 0
        %1624 = vmatprep.subr.bf16.mxu0 0
        %1625 = vmatpush1.bf16.msra.mxu0 0
        %1626 = vmatprep.subr.bf16.mxu0 0
        %1627 = vmatpush1.bf16.msra.mxu0 0
        %1628 = vmatprep.subr.bf16.mxu0 0
        %1629 = vmatpush1.bf16.msra.mxu0 0
        %1630 = vmatprep.subr.bf16.mxu0 0
        %1631 = vmatpush1.bf16.msra.mxu0 0
        %1632 = vmatprep.subr.bf16.mxu0 0
        %1633 = vmatpush1.bf16.msra.mxu0 0
        %1634 = vmatprep.subr.bf16.mxu0 0
        %1635 = vmatpush1.bf16.msra.mxu0 0
        %1636 = vmatprep.subr.bf16.mxu0 0
        %1637 = vmatpush1.bf16.msra.mxu0 0
        %1638 = vmatprep.subr.bf16.mxu0 0
        %1639 = vmatpush1.bf16.msra.mxu0 0
        %1640 = vmatprep.subr.bf16.mxu0 0
        %1641 = vmatpush1.bf16.msra.mxu0 0
        %1642 = vmatprep.subr.bf16.mxu0 0
        %1643 = vmatpush1.bf16.msra.mxu0 0
        %1644 = vmatprep.subr.bf16.mxu0 0
        %1645 = vmatpush1.bf16.msra.mxu0 0
        %1646 = vmatprep.subr.bf16.mxu0 0
        %1647 = vmatpush1.bf16.msra.mxu0 0
        %1648 = vmatprep.mubr.bf16.mxu0 0
        %1649 = vmatmul.mubr.bf16.gmra.mrb[0].mxu0 %v1614
        %v1650 = vpop.f32.mrb[0].mxu0
        %v1651 = vadd.f32 %v1602, %v1650
        %v1652 = vpop.f32.mrb[0].mxu0
        %v1653 = vpop.f32.mrb[0].mxu0
        %v1654 = vpop.f32.mrb[0].mxu0
        %1655 = vdwg.mxu0
        %v1656 = vld [vmem:[%s14 + $0x10] sm:$0x1]
        %v1657 = vunpack.c.l.bf16 %v1656
        %v1658 = vlaneseq
        %v1659 = vshrl.u32 %v1658, 7
        %v1660 = vsub.s32 0, %v1659
        %v1661 = vrot.slane %v1657, %v1660
        %v1662 = vadd.f32 %v1651, %v1661
        %1663 = vst.msk [vmem:[%s498] sm:$0xff] %vm1563, %v1662
        %s1664 = sand.u32 %s362, 1
        %s1665 = scalar_lea.sflag [#allocation4], %s1664
        %s1666 = sand.u32 %s362, 1
        %s1667 = smul.addr %s1666, 8
        %s1668 = scalar_lea.vmem [#allocation3], %s1667
        // Predicated region
        $region81: #{tpu_custom_call.1} parent=79 // pred_check
          %p1669 = pneg %p372
        $region82: #{tpu_custom_call.1} parent=79 // pred_check_branch
          %1671 = sbr.rel (%p1669) target = $region84
        $region83: #{tpu_custom_call.1} parent=79 // pred_region
          %s1673 = ssub.s32 128, 128
          %1674 = vsyncadd %s1665, %s1673
          %s1675 = smul.addr %s29, 128
          %s1676 = scalar_lea.hbm %s15, %s1675
          %s1678 = sshll.u32 %s1668, 4
          %s1679 = int_to_ptr.vmem [resolvable:$true] %s1678
          %1681 = dma.vmem_to_hbm [thread:$0]  %s1679, 128, %s1676, %s1665
        $region84: #{tpu_custom_call.1} parent=79 // pred_fallthru
          _
      $region80: #{tpu_custom_call.1} parent=5 // pred_fallthru
        _
      %p1682 = scmp.le.s32.totalorder 2, %s24
      // Predicated region
      $region85: #{tpu_custom_call.1} parent=5 // pred_check
        %p1683 = pneg %p1682
      $region86: #{tpu_custom_call.1} parent=5 // pred_check_branch
        %1685 = sbr.rel (%p1683) target = $region88
      $region87: #{tpu_custom_call.1} parent=5 // pred_region
        %s1686 = ssub.s32 %s24, 2
        // Predicated region
        $region89: #{tpu_custom_call.1} parent=87 // pred_check
          %p1687 = pneg %p378
        $region90: #{tpu_custom_call.1} parent=87 // pred_check_branch
          %1689 = sbr.rel (%p1687) target = $region92
        $region91: #{tpu_custom_call.1} parent=87 // pred_region
          %s1690 = sand.u32 %s363, 1
          %s1691 = scalar_lea.sflag [#allocation4], %s1690
          %s1692 = sand.u32 %s363, 1
          %s1693 = smul.addr %s1692, 8
          %s1694 = scalar_lea.vmem [#allocation3], %s1693
          %1695 = dma.done %s1691, 128
        $region92: #{tpu_custom_call.1} parent=87 // pred_fallthru
          _
      $region88: #{tpu_custom_call.1} parent=5 // pred_fallthru
        _
    $region6: #{tpu_custom_call.1} parent=1 // loop_footer
      %s28 = sadd.s32 1, %s24
    $region7: #{tpu_custom_call.1} parent=1 // loop_footer_branch
      %23 = sbr.rel target = $region3
    $region8: #{tpu_custom_call.1} parent=1 // loop_exit
      _
    %1696 = vsyncpa [#allocation4], 1
    %s1697 = scalar_lea.sflag [#allocation4], 1
    %1698 = vsyncpa %s1697, 1

</llo_original>
